<compile_context>
chip_gen: v7x
topology: tpu7x:2x2x1
jax: 0.10.0
libtpu: 0.0.40
codegen_flags: <defaults>
</compile_context>

<pallas_src>
import functools

import jax
import jax.numpy as jnp
from jax.experimental import pallas as pl
from jax.experimental.pallas import tpu as pltpu


def _encoder_kernel(num_heads, compute_dtype,
                    x_ref, mask_ref,
                    ln1_g, ln1_b, wqkv, bqkv, wo, bo,
                    ln2_g, ln2_b, w1, b1, w2, b2,
                    o_ref, ctx_scratch):
    layer = pl.program_id(1)

    TB, S, D = x_ref.shape
    H = num_heads
    Dh = D // H
    M = TB * S
    scale = jnp.float32(1.0 / (Dh ** 0.5))
    eps = jnp.float32(1e-5)

    # Seed the VMEM-resident activation block with the encoder input on the
    # first layer; later layers read & update it in place (its block index is
    # constant along the layer grid axis, so it is only written back to HBM
    # after the last layer of this batch block).
    @pl.when(layer == 0)
    def _():
        o_ref[...] = x_ref[...]

    x = o_ref[...].astype(jnp.float32).reshape(M, D)

    # Additive key-padding bias: 0.0 for valid keys, -1e9 for padded keys.
    # Scores stay f32, so -1e9 is safe (dtype-aware constant would be needed
    # only if scores were ever computed in bf16/fp8).
    bias = (mask_ref[...].astype(jnp.float32) - 1.0) * jnp.float32(1e9)    # (TB,1,S)

    def layernorm(t, g, b):
        mu = jnp.mean(t, axis=-1, keepdims=True)
        tc = t - mu
        var = jnp.mean(tc * tc, axis=-1, keepdims=True)
        return tc * jax.lax.rsqrt(var + eps) * g + b

    # ---- pre-LayerNorm 1 + fused QKV projection ----
    xn = layernorm(x, ln1_g[0], ln1_b[0])                                   # (M, D) f32
    qkv_f32 = jnp.dot(xn.astype(compute_dtype), wqkv[0],
                      preferred_element_type=jnp.float32) + bqkv[0]         # (M, 3D) f32
    qkv = qkv_f32.astype(compute_dtype)        # single cast for all attention matmuls

    # ---- multi-head attention ----
    # Per-head contexts are written into a VMEM scratch tile so that the output
    # projection below is ONE full-contraction matmul (K = D, not K = Dh).
    # TODO(synk): replace the static head loop with a rank-4 batched einsum
    # ('bqhd,bkhd->bhqk') once multi-batch dot_general lowering is guaranteed.
    for h in range(H):
        qh = qkv[:, h * Dh:(h + 1) * Dh].reshape(TB, S, Dh)
        kh = qkv[:, D + h * Dh:D + (h + 1) * Dh].reshape(TB, S, Dh)
        vh = qkv[:, 2 * D + h * Dh:2 * D + (h + 1) * Dh].reshape(TB, S, Dh)

        s = jnp.einsum("bqd,bkd->bqk", qh, kh,
                       preferred_element_type=jnp.float32) * scale + bias   # (TB,S,S)
        s = s - jnp.max(s, axis=-1, keepdims=True)
        p = jnp.exp(s)
        p = p * pl.reciprocal(jnp.sum(p, axis=-1, keepdims=True), approx=True)
        ctx = jnp.einsum("bqk,bkd->bqd", p.astype(compute_dtype), vh,
                         preferred_element_type=jnp.float32)                # (TB,S,Dh)
        ctx_scratch[:, h * Dh:(h + 1) * Dh] = ctx.reshape(M, Dh)

    # Single full-K output projection over the concatenated heads.
    ctx_all = ctx_scratch[...].astype(compute_dtype)                        # (M, D)
    h1 = x + jnp.dot(ctx_all, wo[0],
                     preferred_element_type=jnp.float32) + bo[0]   # residual; dropout = identity (eval)

    # ---- pre-LayerNorm 2 + MLP ----
    hn = layernorm(h1, ln2_g[0], ln2_b[0])
    z = jnp.dot(hn.astype(compute_dtype), w1[0],
                preferred_element_type=jnp.float32) + b1[0]
    # TODO(synk): PyTorch nn.GELU default is exact erf GELU; tanh approximation
    # kept here for guaranteed TPU lowering (numerically very close).
    z = jax.nn.gelu(z, approximate=True)
    z = jnp.dot(z.astype(compute_dtype), w2[0],
                preferred_element_type=jnp.float32) + b2[0]

    o_ref[...] = (h1 + z).reshape(TB, S, D).astype(o_ref.dtype)


# --------------------------------------------------------------------------- #
# wrapper: generation-aware block sizing + VMEM accounting
# --------------------------------------------------------------------------- #

def _tpu_topology():
    """(vmem_capacity_bytes, has_two_tensorcores). Safe fallbacks off-TPU."""
    vmem_cap = 128 * 1024 * 1024
    two_cores = False
    try:
        info = pltpu.get_tpu_info()
        vmem_cap = int(getattr(info, "vmem_capacity_bytes", vmem_cap))
    except Exception:
        pass
    try:
        kind = jax.devices()[0].device_kind.lower()
        two_cores = ("v7" in kind) or ("7x" in kind)
    except Exception:
        pass
    return vmem_cap, two_cores


def _vmem_need_bytes(TB, S, D, Wd, wblock):
    """Conservative per-batch-block VMEM footprint, incl. f32 intermediates."""
    M = TB * S
    f32 = 4
    act = 2 * (2 * TB * S * D * f32)          # x-in + out blocks, double-buffered
    mask = 2 * TB * S * f32
    scratch = M * D * f32                     # ctx scratch
    inter = (M * D * f32 * 8                  # x, xn, h1, hn, attn-out, temps
             + M * 3 * D * (f32 + 2)          # qkv f32 + bf16 copy
             + 2 * TB * S * S * f32           # scores + probs (one head live)
             + M * Wd * (f32 + 2))            # MLP hidden f32 + bf16
    return 2 * wblock + act + mask + scratch + inter + (2 << 20)


def _choose_block_b(B, S, D, Wd, wblock, vmem_budget, two_cores):
    """Largest divisor of B whose footprint fits VMEM.  Only force >=2 batch
    blocks when the chip actually has 2 TensorCores (v7x); on v5e/v6e a single
    block avoids re-streaming the weights."""
    divisors = [d for d in range(B, 0, -1) if B % d == 0]
    for tb in divisors:
        if two_cores and B >= 2 and tb == B:
            continue
        if _vmem_need_bytes(tb, S, D, Wd, wblock) <= vmem_budget:
            return tb
    return 1


def transformer_encoder(x, data_mask, params, num_heads, *,
                        block_b=None, compute_dtype=jnp.bfloat16):
    """x: (B, S, D); data_mask: (B, S) bool or None (True = valid token)."""
    B, S, D = x.shape
    L = len(params)
    H = num_heads
    Dh = D // H

    if data_mask is None:
        mask = jnp.ones((B, 1, S), jnp.float32)
    else:
        mask = data_mask.astype(jnp.float32).reshape(B, 1, S)

    # ---- stack per-layer weights on a leading L axis (streamed per layer) ----
    f32 = jnp.float32
    ln1_g = jnp.stack([p[0] for p in params]).astype(f32)                   # (L,1,D)
    ln1_b = jnp.stack([p[1] for p in params]).astype(f32)
    # fused QKV weight: (L, D, 3D); matmul weights in bf16 (MXU operands only)
    wqkv = jnp.stack([jnp.concatenate([p[2], p[4], p[6]], axis=-1)
                      for p in params]).astype(compute_dtype)
    bqkv = jnp.stack([jnp.concatenate([p[3], p[5], p[7]], axis=-1)
                      for p in params]).astype(f32)                          # (L,1,3D)
    wo = jnp.stack([p[8] for p in params]).astype(compute_dtype)             # (L,D,D)
    bo = jnp.stack([p[9] for p in params]).astype(f32)                       # (L,1,D)
    ln2_g = jnp.stack([p[10] for p in params]).astype(f32)
    ln2_b = jnp.stack([p[11] for p in params]).astype(f32)
    w1 = jnp.stack([p[12] for p in params]).astype(compute_dtype)            # (L,D,Wd)
    b1 = jnp.stack([p[13] for p in params]).astype(f32)                      # (L,1,Wd)
    w2 = jnp.stack([p[14] for p in params]).astype(compute_dtype)            # (L,Wd,D)
    b2 = jnp.stack([p[15] for p in params]).astype(f32)                      # (L,1,D)
    weights = (ln1_g, ln1_b, wqkv, bqkv, wo, bo, ln2_g, ln2_b, w1, b1, w2, b2)
    Wd = w1.shape[-1]
    wblock = sum(int(w.nbytes) // L for w in weights)   # one layer's weight block

    vmem_cap, two_cores = _tpu_topology()
    vmem_budget = int(0.9 * vmem_cap)

    if block_b is not None:
        TB = block_b
    else:
        TB = _choose_block_b(B, S, D, Wd, wblock, vmem_budget, two_cores)
    assert B % TB == 0
    num_batch_blocks = B // TB

    # TODO(synk): if D < 128 (tiny embed dims like the test config) every vreg
    # and MXU pass is mostly masked; pad D to 128 in the packed weights or
    # route such shapes through plain XLA instead.

    def _weight_spec(w):
        nz = w.ndim - 1
        return pl.BlockSpec((1,) + w.shape[1:],
                            lambda b, l, _nz=nz: (l,) + (0,) * _nz)

    in_specs = [pl.BlockSpec((TB, S, D), lambda b, l: (b, 0, 0)),
                pl.BlockSpec((TB, 1, S), lambda b, l: (b, 0, 0))]
    in_specs += [_weight_spec(w) for w in weights]
    out_spec = pl.BlockSpec((TB, S, D), lambda b, l: (b, 0, 0))

    # VMEM limit: conservative need (weights double-buffered + activations +
    # f32 intermediates), clamped to the physical per-core capacity.
    vmem_need = _vmem_need_bytes(TB, S, D, Wd, wblock)
    vmem_limit = int(min(max(vmem_need, 32 * 1024 * 1024), vmem_cap))

    flops_layer = (2 * B * S * D * 3 * D          # fused QKV
                   + 4 * B * H * S * S * Dh       # attention scores + context
                   + 2 * B * S * D * D            # output projection
                   + 4 * B * S * D * Wd)          # MLP
    cost = pl.CostEstimate(
        flops=L * flops_layer,
        transcendentals=L * (B * H * S * S + B * S * Wd),
        # weights are streamed once per batch block
        bytes_accessed=int(2 * x.nbytes + mask.nbytes
                           + num_batch_blocks * sum(int(w.nbytes) for w in weights)))

    kernel = functools.partial(_encoder_kernel, num_heads, compute_dtype)

    return pl.pallas_call(
        kernel,
        out_shape=jax.ShapeDtypeStruct((B, S, D), x.dtype),
        grid=(num_batch_blocks, L),
        in_specs=in_specs,
        out_specs=out_spec,
        scratch_shapes=[pltpu.VMEM((TB * S, D), jnp.float32)],   # concat'd head ctx
        compiler_params=pltpu.CompilerParams(
            dimension_semantics=("parallel", "arbitrary"),
            vmem_limit_bytes=vmem_limit),
        cost_estimate=cost,
    )(x, mask, *weights)


def init_params(key, num_layers, embed_dim, widening_factor):
    D = embed_dim
    Wd = widening_factor * D
    s = 0.02
    params = []
    for lk in jax.random.split(key, num_layers):
        ks = jax.random.split(lk, 6)
        params.append((
            jnp.ones((1, D), jnp.float32),                      # ln1 gamma
            jnp.zeros((1, D), jnp.float32),                     # ln1 beta
            s * jax.random.normal(ks[0], (D, D), jnp.float32),  # Wq
            jnp.zeros((1, D), jnp.float32),                     # bq
            s * jax.random.normal(ks[1], (D, D), jnp.float32),  # Wk
            jnp.zeros((1, D), jnp.float32),                     # bk
            s * jax.random.normal(ks[2], (D, D), jnp.float32),  # Wv
            jnp.zeros((1, D), jnp.float32),                     # bv
            s * jax.random.normal(ks[3], (D, D), jnp.float32),  # Wo
            jnp.zeros((1, D), jnp.float32),                     # bo
            jnp.ones((1, D), jnp.float32),                      # ln2 gamma
            jnp.zeros((1, D), jnp.float32),                     # ln2 beta
            s * jax.random.normal(ks[4], (D, Wd), jnp.float32), # MLP W1
            jnp.zeros((1, Wd), jnp.float32),                    # MLP b1
            s * jax.random.normal(ks[5], (Wd, D), jnp.float32), # MLP W2
            jnp.zeros((1, D), jnp.float32),                     # MLP b2
        ))
    return params


def _reference(x, data_mask, params, num_heads):
    """Pure-JAX f32 reference of the same forward pass (for a tolerance check)."""
    B, S, D = x.shape
    H = num_heads
    Dh = D // H
    maskf = (jnp.ones((B, S), jnp.float32) if data_mask is None
             else data_mask.astype(jnp.float32))
    bias = (maskf - 1.0)[:, None, None, :] * 1e9            # (B,1,1,S)

    def ln(t, g, b):
        mu = jnp.mean(t, -1, keepdims=True)
        var = jnp.mean((t - mu) ** 2, -1, keepdims=True)
        return (t - mu) * jax.lax.rsqrt(var + 1e-5) * g + b

    out = x
    for (g1, be1, wq, bq, wk, bk, wv, bv, wo_, bo_, g2, be2, wm1, bm1, wm2, bm2) in params:
        xn = ln(out, g1, be1)
        q = (xn @ wq + bq).reshape(B, S, H, Dh).transpose(0, 2, 1, 3)
        k = (xn @ wk + bk).reshape(B, S, H, Dh).transpose(0, 2, 1, 3)
        v = (xn @ wv + bv).reshape(B, S, H, Dh).transpose(0, 2, 1, 3)
        s = jnp.einsum("bhqd,bhkd->bhqk", q, k) / (Dh ** 0.5) + bias
        p = jax.nn.softmax(s, axis=-1)
        ctx = jnp.einsum("bhqk,bhkd->bhqd", p, v).transpose(0, 2, 1, 3).reshape(B, S, D)
        h1 = out + ctx @ wo_ + bo_
        hn = ln(h1, g2, be2)
        z = jax.nn.gelu(hn @ wm1 + bm1, approximate=True) @ wm2 + bm2
        out = h1 + z
    return out


if __name__ == "__main__":
    # TransformerEncoder(embed_dim=32, num_heads=4, activation="gelu",
    #                    widening_factor=2, dropout_p=0.0, num_layers=2)
    B, S, D, H, WF, L = 2, 8, 32, 4, 2, 2

    key = jax.random.PRNGKey(0)
    kx, kp = jax.random.split(key)
    x = jax.random.normal(kx, (B, S, D), jnp.float32)
    # last two positions of each sequence are padding
    data_mask = jnp.concatenate(
        [jnp.ones((B, S - 2), bool), jnp.zeros((B, 2), bool)], axis=1)

    params = init_params(kp, L, D, WF)

    out = transformer_encoder(x, data_mask, params, H)
    jax.block_until_ready(out)

    assert out.shape == (B, S, D) and out.dtype == jnp.float32
    assert bool(jnp.all(jnp.isfinite(out)))

    ref = _reference(x, data_mask, params, H)
    err = float(jnp.max(jnp.abs(out - ref)))
    assert err < 5e-2, f"max |kernel - reference| = {err}"

    # TODO(synk): dropout_p > 0 (training mode) not implemented; eval-mode identity used.
    print("KERNEL_OK")
</pallas_src>

<mosaic_0001>
module attributes {stable_mosaic.version = 11 : i64} {
  func.func @_encoder_kernel(%arg0: i32, %arg1: i32, %arg2: memref<2x8x32xf32, #tpu.memory_space<vmem>>, %arg3: memref<2x1x8xf32, #tpu.memory_space<vmem>>, %arg4: memref<1x1x32xf32, #tpu.memory_space<vmem>>, %arg5: memref<1x1x32xf32, #tpu.memory_space<vmem>>, %arg6: memref<1x32x96xbf16, #tpu.memory_space<vmem>>, %arg7: memref<1x1x96xf32, #tpu.memory_space<vmem>>, %arg8: memref<1x32x32xbf16, #tpu.memory_space<vmem>>, %arg9: memref<1x1x32xf32, #tpu.memory_space<vmem>>, %arg10: memref<1x1x32xf32, #tpu.memory_space<vmem>>, %arg11: memref<1x1x32xf32, #tpu.memory_space<vmem>>, %arg12: memref<1x32x64xbf16, #tpu.memory_space<vmem>>, %arg13: memref<1x1x64xf32, #tpu.memory_space<vmem>>, %arg14: memref<1x64x32xbf16, #tpu.memory_space<vmem>>, %arg15: memref<1x1x32xf32, #tpu.memory_space<vmem>>, %arg16: memref<2x8x32xf32, #tpu.memory_space<vmem>>, %arg17: memref<16x32xf32, #tpu.memory_space<vmem>>) attributes {dimension_semantics = [#tpu.dimension_semantics<parallel>, #tpu.dimension_semantics<arbitrary>], iteration_bounds = array<i64: 1, 2>, scalar_prefetch = 0 : i64, scratch_operands = 1 : i64, tpu.core_type = #tpu.core_type<tc>, window_params = [{transform_indices = @transform_0, window_bounds = array<i64: 2, 8, 32>}, {transform_indices = @transform_1, window_bounds = array<i64: 2, 1, 8>}, {transform_indices = @transform_2, window_bounds = array<i64: 1, 1, 32>}, {transform_indices = @transform_3, window_bounds = array<i64: 1, 1, 32>}, {transform_indices = @transform_4, window_bounds = array<i64: 1, 32, 96>}, {transform_indices = @transform_5, window_bounds = array<i64: 1, 1, 96>}, {transform_indices = @transform_6, window_bounds = array<i64: 1, 32, 32>}, {transform_indices = @transform_7, window_bounds = array<i64: 1, 1, 32>}, {transform_indices = @transform_8, window_bounds = array<i64: 1, 1, 32>}, {transform_indices = @transform_9, window_bounds = array<i64: 1, 1, 32>}, {transform_indices = @transform_10, window_bounds = array<i64: 1, 32, 64>}, {transform_indices = @transform_11, window_bounds = array<i64: 1, 1, 64>}, {transform_indices = @transform_12, window_bounds = array<i64: 1, 64, 32>}, {transform_indices = @transform_13, window_bounds = array<i64: 1, 1, 32>}, {transform_indices = @transform_14, window_bounds = array<i64: 2, 8, 32>}]} {
    %c0_i32 = arith.constant 0 : i32
    %0 = arith.cmpi eq, %arg1, %c0_i32 : i32
    %1 = arith.extui %0 : i1 to i32
    %c0_i32_0 = arith.constant 0 : i32
    %2 = arith.cmpi ne, %1, %c0_i32_0 : i32
    scf.if %2 {
      %c0_91 = arith.constant 0 : index
      %c0_92 = arith.constant 0 : index
      %c0_93 = arith.constant 0 : index
      %209 = vector.load %arg2[%c0_91, %c0_92, %c0_93] : memref<2x8x32xf32, #tpu.memory_space<vmem>>, vector<2x8x32xf32>
      %c0_94 = arith.constant 0 : index
      %c0_95 = arith.constant 0 : index
      %c0_96 = arith.constant 0 : index
      %210 = vector.load %arg16[%c0_94, %c0_95, %c0_96] : memref<2x8x32xf32, #tpu.memory_space<vmem>>, vector<2x8x32xf32>
      tpu.vector_store %arg16[%c0_94, %c0_95, %c0_96], %209 {strides = array<i32>} : memref<2x8x32xf32, #tpu.memory_space<vmem>>, vector<2x8x32xf32>,
    } else {
    }
    %c0 = arith.constant 0 : index
    %c0_1 = arith.constant 0 : index
    %c0_2 = arith.constant 0 : index
    %3 = vector.load %arg16[%c0, %c0_1, %c0_2] : memref<2x8x32xf32, #tpu.memory_space<vmem>>, vector<2x8x32xf32>
    %4 = vector.shape_cast %3 : vector<2x8x32xf32> to vector<16x32xf32>
    %c0_3 = arith.constant 0 : index
    %c0_4 = arith.constant 0 : index
    %c0_5 = arith.constant 0 : index
    %5 = vector.load %arg3[%c0_3, %c0_4, %c0_5] : memref<2x1x8xf32, #tpu.memory_space<vmem>>, vector<2x1x8xf32>
    %cst = arith.constant 1.000000e+00 : f32
    %6 = vector.broadcast %cst : f32 to vector<2x1x8xf32>
    %7 = arith.subf %5, %6 : vector<2x1x8xf32>
    %cst_6 = arith.constant 1.000000e+09 : f32
    %8 = vector.broadcast %cst_6 : f32 to vector<2x1x8xf32>
    %9 = arith.mulf %7, %8 : vector<2x1x8xf32>
    %c0_7 = arith.constant 0 : index
    %c0_8 = arith.constant 0 : index
    %c0_9 = arith.constant 0 : index
    %10 = vector.load %arg4[%c0_7, %c0_8, %c0_9] : memref<1x1x32xf32, #tpu.memory_space<vmem>>, vector<1x1x32xf32>
    %11 = vector.shape_cast %10 : vector<1x1x32xf32> to vector<1x32xf32>
    %c0_10 = arith.constant 0 : index
    %c0_11 = arith.constant 0 : index
    %c0_12 = arith.constant 0 : index
    %12 = vector.load %arg5[%c0_10, %c0_11, %c0_12] : memref<1x1x32xf32, #tpu.memory_space<vmem>>, vector<1x1x32xf32>
    %13 = vector.shape_cast %12 : vector<1x1x32xf32> to vector<1x32xf32>
    %cst_13 = arith.constant dense<0.000000e+00> : vector<16xf32>
    %14 = vector.multi_reduction <add>, %4, %cst_13 [1] : vector<16x32xf32> to vector<16xf32>
    %15 = vector.shape_cast %14 : vector<16xf32> to vector<16x1xf32>
    %cst_14 = arith.constant 3.200000e+01 : f32
    %16 = vector.broadcast %cst_14 : f32 to vector<16x1xf32>
    %17 = arith.divf %15, %16 : vector<16x1xf32>
    %18 = vector.broadcast %17 : vector<16x1xf32> to vector<16x32xf32>
    %19 = arith.subf %4, %18 : vector<16x32xf32>
    %20 = arith.mulf %19, %19 : vector<16x32xf32>
    %cst_15 = arith.constant dense<0.000000e+00> : vector<16xf32>
    %21 = vector.multi_reduction <add>, %20, %cst_15 [1] : vector<16x32xf32> to vector<16xf32>
    %22 = vector.shape_cast %21 : vector<16xf32> to vector<16x1xf32>
    %cst_16 = arith.constant 3.200000e+01 : f32
    %23 = vector.broadcast %cst_16 : f32 to vector<16x1xf32>
    %24 = arith.divf %22, %23 : vector<16x1xf32>
    %cst_17 = arith.constant 9.99999974E-6 : f32
    %25 = vector.broadcast %cst_17 : f32 to vector<16x1xf32>
    %26 = arith.addf %24, %25 : vector<16x1xf32>
    %27 = math.rsqrt %26 : vector<16x1xf32>
    %28 = vector.broadcast %27 : vector<16x1xf32> to vector<16x32xf32>
    %29 = arith.mulf %19, %28 : vector<16x32xf32>
    %30 = vector.broadcast %11 : vector<1x32xf32> to vector<16x32xf32>
    %31 = arith.mulf %29, %30 : vector<16x32xf32>
    %32 = vector.broadcast %13 : vector<1x32xf32> to vector<16x32xf32>
    %33 = arith.addf %31, %32 : vector<16x32xf32>
    %34 = arith.truncf %33 : vector<16x32xf32> to vector<16x32xbf16>
    %c0_18 = arith.constant 0 : index
    %c0_19 = arith.constant 0 : index
    %c0_20 = arith.constant 0 : index
    %35 = vector.load %arg6[%c0_18, %c0_19, %c0_20] : memref<1x32x96xbf16, #tpu.memory_space<vmem>>, vector<1x32x96xbf16>
    %36 = vector.shape_cast %35 : vector<1x32x96xbf16> to vector<32x96xbf16>
    %cst_21 = arith.constant dense<0.000000e+00> : vector<16x96xf32>
    %37 = tpu.matmul %34, %36, %cst_21 {dimension_numbers = #tpu.dot_dimension_numbers<[1], [0], [0], [1], [0, 0, 1, 1], [], []>} : vector<16x32xbf16>, vector<32x96xbf16>, vector<16x96xf32> -> vector<16x96xf32>
    %c0_22 = arith.constant 0 : index
    %c0_23 = arith.constant 0 : index
    %c0_24 = arith.constant 0 : index
    %38 = vector.load %arg7[%c0_22, %c0_23, %c0_24] : memref<1x1x96xf32, #tpu.memory_space<vmem>>, vector<1x1x96xf32>
    %39 = vector.shape_cast %38 : vector<1x1x96xf32> to vector<1x96xf32>
    %40 = vector.broadcast %39 : vector<1x96xf32> to vector<16x96xf32>
    %41 = arith.addf %37, %40 : vector<16x96xf32>
    %42 = arith.truncf %41 : vector<16x96xf32> to vector<16x96xbf16>
    %43 = vector.extract_strided_slice %42 {offsets = [0, 0], sizes = [16, 8], strides = [1, 1]} : vector<16x96xbf16> to vector<16x8xbf16>
    %44 = vector.shape_cast %43 : vector<16x8xbf16> to vector<2x8x8xbf16>
    %45 = vector.extract_strided_slice %42 {offsets = [0, 32], sizes = [16, 8], strides = [1, 1]} : vector<16x96xbf16> to vector<16x8xbf16>
    %46 = vector.shape_cast %45 : vector<16x8xbf16> to vector<2x8x8xbf16>
    %47 = vector.extract_strided_slice %42 {offsets = [0, 64], sizes = [16, 8], strides = [1, 1]} : vector<16x96xbf16> to vector<16x8xbf16>
    %48 = vector.shape_cast %47 : vector<16x8xbf16> to vector<2x8x8xbf16>
    "tpu.trace_start"() <{level = 10 : i32, message = "bqd,bkd->bqk"}> : () -> ()
    %cst_25 = arith.constant dense<0.000000e+00> : vector<2x8x8xf32>
    %49 = tpu.matmul %44, %46, %cst_25 {dimension_numbers = #tpu.dot_dimension_numbers<[2], [2], [1], [1], [0, 0, 0, 1, 1, 1], [0], [0]>} : vector<2x8x8xbf16>, vector<2x8x8xbf16>, vector<2x8x8xf32> -> vector<2x8x8xf32>
    "tpu.trace_stop"() : () -> ()
    %cst_26 = arith.constant 0.353553385 : f32
    %50 = vector.broadcast %cst_26 : f32 to vector<2x8x8xf32>
    %51 = arith.mulf %49, %50 : vector<2x8x8xf32>
    %52 = vector.broadcast %9 : vector<2x1x8xf32> to vector<2x8x8xf32>
    %53 = arith.addf %51, %52 : vector<2x8x8xf32>
    %cst_27 = arith.constant dense<0xFF800000> : vector<2x8xf32>
    %54 = vector.multi_reduction <maximumf>, %53, %cst_27 [2] : vector<2x8x8xf32> to vector<2x8xf32>
    %55 = vector.shape_cast %54 : vector<2x8xf32> to vector<2x8x1xf32>
    %56 = vector.broadcast %55 : vector<2x8x1xf32> to vector<2x8x8xf32>
    %57 = arith.subf %53, %56 : vector<2x8x8xf32>
    %58 = math.exp %57 : vector<2x8x8xf32>
    %cst_28 = arith.constant dense<0.000000e+00> : vector<2x8xf32>
    %59 = vector.multi_reduction <add>, %58, %cst_28 [2] : vector<2x8x8xf32> to vector<2x8xf32>
    %60 = vector.shape_cast %59 : vector<2x8xf32> to vector<2x8x1xf32>
    %61 = tpu.reciprocal %60 {approx = true} : vector<2x8x1xf32> -> vector<2x8x1xf32>
    %62 = vector.broadcast %61 : vector<2x8x1xf32> to vector<2x8x8xf32>
    %63 = arith.mulf %58, %62 : vector<2x8x8xf32>
    %64 = arith.truncf %63 : vector<2x8x8xf32> to vector<2x8x8xbf16>
    "tpu.trace_start"() <{level = 10 : i32, message = "bqk,bkd->bqd"}> : () -> ()
    %cst_29 = arith.constant dense<0.000000e+00> : vector<2x8x8xf32>
    %65 = tpu.matmul %64, %48, %cst_29 {dimension_numbers = #tpu.dot_dimension_numbers<[2], [1], [1], [2], [0, 0, 0, 1, 1, 2], [0], [0]>} : vector<2x8x8xbf16>, vector<2x8x8xbf16>, vector<2x8x8xf32> -> vector<2x8x8xf32>
    "tpu.trace_stop"() : () -> ()
    %66 = vector.shape_cast %65 : vector<2x8x8xf32> to vector<16x8xf32>
    %c0_30 = arith.constant 0 : index
    %c0_31 = arith.constant 0 : index
    %67 = vector.load %arg17[%c0_30, %c0_31] : memref<16x32xf32, #tpu.memory_space<vmem>>, vector<16x8xf32>
    tpu.vector_store %arg17[%c0_30, %c0_31], %66 {strides = array<i32>} : memref<16x32xf32, #tpu.memory_space<vmem>>, vector<16x8xf32>,
    %68 = vector.extract_strided_slice %42 {offsets = [0, 8], sizes = [16, 8], strides = [1, 1]} : vector<16x96xbf16> to vector<16x8xbf16>
    %69 = vector.shape_cast %68 : vector<16x8xbf16> to vector<2x8x8xbf16>
    %70 = vector.extract_strided_slice %42 {offsets = [0, 40], sizes = [16, 8], strides = [1, 1]} : vector<16x96xbf16> to vector<16x8xbf16>
    %71 = vector.shape_cast %70 : vector<16x8xbf16> to vector<2x8x8xbf16>
    %72 = vector.extract_strided_slice %42 {offsets = [0, 72], sizes = [16, 8], strides = [1, 1]} : vector<16x96xbf16> to vector<16x8xbf16>
    %73 = vector.shape_cast %72 : vector<16x8xbf16> to vector<2x8x8xbf16>
    "tpu.trace_start"() <{level = 10 : i32, message = "bqd,bkd->bqk"}> : () -> ()
    %cst_32 = arith.constant dense<0.000000e+00> : vector<2x8x8xf32>
    %74 = tpu.matmul %69, %71, %cst_32 {dimension_numbers = #tpu.dot_dimension_numbers<[2], [2], [1], [1], [0, 0, 0, 1, 1, 1], [0], [0]>} : vector<2x8x8xbf16>, vector<2x8x8xbf16>, vector<2x8x8xf32> -> vector<2x8x8xf32>
    "tpu.trace_stop"() : () -> ()
    %cst_33 = arith.constant 0.353553385 : f32
    %75 = vector.broadcast %cst_33 : f32 to vector<2x8x8xf32>
    %76 = arith.mulf %74, %75 : vector<2x8x8xf32>
    %77 = vector.broadcast %9 : vector<2x1x8xf32> to vector<2x8x8xf32>
    %78 = arith.addf %76, %77 : vector<2x8x8xf32>
    %cst_34 = arith.constant dense<0xFF800000> : vector<2x8xf32>
    %79 = vector.multi_reduction <maximumf>, %78, %cst_34 [2] : vector<2x8x8xf32> to vector<2x8xf32>
    %80 = vector.shape_cast %79 : vector<2x8xf32> to vector<2x8x1xf32>
    %81 = vector.broadcast %80 : vector<2x8x1xf32> to vector<2x8x8xf32>
    %82 = arith.subf %78, %81 : vector<2x8x8xf32>
    %83 = math.exp %82 : vector<2x8x8xf32>
    %cst_35 = arith.constant dense<0.000000e+00> : vector<2x8xf32>
    %84 = vector.multi_reduction <add>, %83, %cst_35 [2] : vector<2x8x8xf32> to vector<2x8xf32>
    %85 = vector.shape_cast %84 : vector<2x8xf32> to vector<2x8x1xf32>
    %86 = tpu.reciprocal %85 {approx = true} : vector<2x8x1xf32> -> vector<2x8x1xf32>
    %87 = vector.broadcast %86 : vector<2x8x1xf32> to vector<2x8x8xf32>
    %88 = arith.mulf %83, %87 : vector<2x8x8xf32>
    %89 = arith.truncf %88 : vector<2x8x8xf32> to vector<2x8x8xbf16>
    "tpu.trace_start"() <{level = 10 : i32, message = "bqk,bkd->bqd"}> : () -> ()
    %cst_36 = arith.constant dense<0.000000e+00> : vector<2x8x8xf32>
    %90 = tpu.matmul %89, %73, %cst_36 {dimension_numbers = #tpu.dot_dimension_numbers<[2], [1], [1], [2], [0, 0, 0, 1, 1, 2], [0], [0]>} : vector<2x8x8xbf16>, vector<2x8x8xbf16>, vector<2x8x8xf32> -> vector<2x8x8xf32>
    "tpu.trace_stop"() : () -> ()
    %91 = vector.shape_cast %90 : vector<2x8x8xf32> to vector<16x8xf32>
    %c0_37 = arith.constant 0 : index
    %c8 = arith.constant 8 : index
    %92 = vector.load %arg17[%c0_37, %c8] : memref<16x32xf32, #tpu.memory_space<vmem>>, vector<16x8xf32>
    tpu.vector_store %arg17[%c0_37, %c8], %91 {strides = array<i32>} : memref<16x32xf32, #tpu.memory_space<vmem>>, vector<16x8xf32>,
    %93 = vector.extract_strided_slice %42 {offsets = [0, 16], sizes = [16, 8], strides = [1, 1]} : vector<16x96xbf16> to vector<16x8xbf16>
    %94 = vector.shape_cast %93 : vector<16x8xbf16> to vector<2x8x8xbf16>
    %95 = vector.extract_strided_slice %42 {offsets = [0, 48], sizes = [16, 8], strides = [1, 1]} : vector<16x96xbf16> to vector<16x8xbf16>
    %96 = vector.shape_cast %95 : vector<16x8xbf16> to vector<2x8x8xbf16>
    %97 = vector.extract_strided_slice %42 {offsets = [0, 80], sizes = [16, 8], strides = [1, 1]} : vector<16x96xbf16> to vector<16x8xbf16>
    %98 = vector.shape_cast %97 : vector<16x8xbf16> to vector<2x8x8xbf16>
    "tpu.trace_start"() <{level = 10 : i32, message = "bqd,bkd->bqk"}> : () -> ()
    %cst_38 = arith.constant dense<0.000000e+00> : vector<2x8x8xf32>
    %99 = tpu.matmul %94, %96, %cst_38 {dimension_numbers = #tpu.dot_dimension_numbers<[2], [2], [1], [1], [0, 0, 0, 1, 1, 1], [0], [0]>} : vector<2x8x8xbf16>, vector<2x8x8xbf16>, vector<2x8x8xf32> -> vector<2x8x8xf32>
    "tpu.trace_stop"() : () -> ()
    %cst_39 = arith.constant 0.353553385 : f32
    %100 = vector.broadcast %cst_39 : f32 to vector<2x8x8xf32>
    %101 = arith.mulf %99, %100 : vector<2x8x8xf32>
    %102 = vector.broadcast %9 : vector<2x1x8xf32> to vector<2x8x8xf32>
    %103 = arith.addf %101, %102 : vector<2x8x8xf32>
    %cst_40 = arith.constant dense<0xFF800000> : vector<2x8xf32>
    %104 = vector.multi_reduction <maximumf>, %103, %cst_40 [2] : vector<2x8x8xf32> to vector<2x8xf32>
    %105 = vector.shape_cast %104 : vector<2x8xf32> to vector<2x8x1xf32>
    %106 = vector.broadcast %105 : vector<2x8x1xf32> to vector<2x8x8xf32>
    %107 = arith.subf %103, %106 : vector<2x8x8xf32>
    %108 = math.exp %107 : vector<2x8x8xf32>
    %cst_41 = arith.constant dense<0.000000e+00> : vector<2x8xf32>
    %109 = vector.multi_reduction <add>, %108, %cst_41 [2] : vector<2x8x8xf32> to vector<2x8xf32>
    %110 = vector.shape_cast %109 : vector<2x8xf32> to vector<2x8x1xf32>
    %111 = tpu.reciprocal %110 {approx = true} : vector<2x8x1xf32> -> vector<2x8x1xf32>
    %112 = vector.broadcast %111 : vector<2x8x1xf32> to vector<2x8x8xf32>
    %113 = arith.mulf %108, %112 : vector<2x8x8xf32>
    %114 = arith.truncf %113 : vector<2x8x8xf32> to vector<2x8x8xbf16>
    "tpu.trace_start"() <{level = 10 : i32, message = "bqk,bkd->bqd"}> : () -> ()
    %cst_42 = arith.constant dense<0.000000e+00> : vector<2x8x8xf32>
    %115 = tpu.matmul %114, %98, %cst_42 {dimension_numbers = #tpu.dot_dimension_numbers<[2], [1], [1], [2], [0, 0, 0, 1, 1, 2], [0], [0]>} : vector<2x8x8xbf16>, vector<2x8x8xbf16>, vector<2x8x8xf32> -> vector<2x8x8xf32>
    "tpu.trace_stop"() : () -> ()
    %116 = vector.shape_cast %115 : vector<2x8x8xf32> to vector<16x8xf32>
    %c0_43 = arith.constant 0 : index
    %c16 = arith.constant 16 : index
    %117 = vector.load %arg17[%c0_43, %c16] : memref<16x32xf32, #tpu.memory_space<vmem>>, vector<16x8xf32>
    tpu.vector_store %arg17[%c0_43, %c16], %116 {strides = array<i32>} : memref<16x32xf32, #tpu.memory_space<vmem>>, vector<16x8xf32>,
    %118 = vector.extract_strided_slice %42 {offsets = [0, 24], sizes = [16, 8], strides = [1, 1]} : vector<16x96xbf16> to vector<16x8xbf16>
    %119 = vector.shape_cast %118 : vector<16x8xbf16> to vector<2x8x8xbf16>
    %120 = vector.extract_strided_slice %42 {offsets = [0, 56], sizes = [16, 8], strides = [1, 1]} : vector<16x96xbf16> to vector<16x8xbf16>
    %121 = vector.shape_cast %120 : vector<16x8xbf16> to vector<2x8x8xbf16>
    %122 = vector.extract_strided_slice %42 {offsets = [0, 88], sizes = [16, 8], strides = [1, 1]} : vector<16x96xbf16> to vector<16x8xbf16>
    %123 = vector.shape_cast %122 : vector<16x8xbf16> to vector<2x8x8xbf16>
    "tpu.trace_start"() <{level = 10 : i32, message = "bqd,bkd->bqk"}> : () -> ()
    %cst_44 = arith.constant dense<0.000000e+00> : vector<2x8x8xf32>
    %124 = tpu.matmul %119, %121, %cst_44 {dimension_numbers = #tpu.dot_dimension_numbers<[2], [2], [1], [1], [0, 0, 0, 1, 1, 1], [0], [0]>} : vector<2x8x8xbf16>, vector<2x8x8xbf16>, vector<2x8x8xf32> -> vector<2x8x8xf32>
    "tpu.trace_stop"() : () -> ()
    %cst_45 = arith.constant 0.353553385 : f32
    %125 = vector.broadcast %cst_45 : f32 to vector<2x8x8xf32>
    %126 = arith.mulf %124, %125 : vector<2x8x8xf32>
    %127 = vector.broadcast %9 : vector<2x1x8xf32> to vector<2x8x8xf32>
    %128 = arith.addf %126, %127 : vector<2x8x8xf32>
    %cst_46 = arith.constant dense<0xFF800000> : vector<2x8xf32>
    %129 = vector.multi_reduction <maximumf>, %128, %cst_46 [2] : vector<2x8x8xf32> to vector<2x8xf32>
    %130 = vector.shape_cast %129 : vector<2x8xf32> to vector<2x8x1xf32>
    %131 = vector.broadcast %130 : vector<2x8x1xf32> to vector<2x8x8xf32>
    %132 = arith.subf %128, %131 : vector<2x8x8xf32>
    %133 = math.exp %132 : vector<2x8x8xf32>
    %cst_47 = arith.constant dense<0.000000e+00> : vector<2x8xf32>
    %134 = vector.multi_reduction <add>, %133, %cst_47 [2] : vector<2x8x8xf32> to vector<2x8xf32>
    %135 = vector.shape_cast %134 : vector<2x8xf32> to vector<2x8x1xf32>
    %136 = tpu.reciprocal %135 {approx = true} : vector<2x8x1xf32> -> vector<2x8x1xf32>
    %137 = vector.broadcast %136 : vector<2x8x1xf32> to vector<2x8x8xf32>
    %138 = arith.mulf %133, %137 : vector<2x8x8xf32>
    %139 = arith.truncf %138 : vector<2x8x8xf32> to vector<2x8x8xbf16>
    "tpu.trace_start"() <{level = 10 : i32, message = "bqk,bkd->bqd"}> : () -> ()
    %cst_48 = arith.constant dense<0.000000e+00> : vector<2x8x8xf32>
    %140 = tpu.matmul %139, %123, %cst_48 {dimension_numbers = #tpu.dot_dimension_numbers<[2], [1], [1], [2], [0, 0, 0, 1, 1, 2], [0], [0]>} : vector<2x8x8xbf16>, vector<2x8x8xbf16>, vector<2x8x8xf32> -> vector<2x8x8xf32>
    "tpu.trace_stop"() : () -> ()
    %141 = vector.shape_cast %140 : vector<2x8x8xf32> to vector<16x8xf32>
    %c0_49 = arith.constant 0 : index
    %c24 = arith.constant 24 : index
    %142 = vector.load %arg17[%c0_49, %c24] : memref<16x32xf32, #tpu.memory_space<vmem>>, vector<16x8xf32>
    tpu.vector_store %arg17[%c0_49, %c24], %141 {strides = array<i32>} : memref<16x32xf32, #tpu.memory_space<vmem>>, vector<16x8xf32>,
    %c0_50 = arith.constant 0 : index
    %c0_51 = arith.constant 0 : index
    %143 = vector.load %arg17[%c0_50, %c0_51] : memref<16x32xf32, #tpu.memory_space<vmem>>, vector<16x32xf32>
    %144 = arith.truncf %143 : vector<16x32xf32> to vector<16x32xbf16>
    %c0_52 = arith.constant 0 : index
    %c0_53 = arith.constant 0 : index
    %c0_54 = arith.constant 0 : index
    %145 = vector.load %arg8[%c0_52, %c0_53, %c0_54] : memref<1x32x32xbf16, #tpu.memory_space<vmem>>, vector<1x32x32xbf16>
    %146 = vector.shape_cast %145 : vector<1x32x32xbf16> to vector<32x32xbf16>
    %cst_55 = arith.constant dense<0.000000e+00> : vector<16x32xf32>
    %147 = tpu.matmul %144, %146, %cst_55 {dimension_numbers = #tpu.dot_dimension_numbers<[1], [0], [0], [1], [0, 0, 1, 1], [], []>} : vector<16x32xbf16>, vector<32x32xbf16>, vector<16x32xf32> -> vector<16x32xf32>
    %148 = arith.addf %4, %147 : vector<16x32xf32>
    %c0_56 = arith.constant 0 : index
    %c0_57 = arith.constant 0 : index
    %c0_58 = arith.constant 0 : index
    %149 = vector.load %arg9[%c0_56, %c0_57, %c0_58] : memref<1x1x32xf32, #tpu.memory_space<vmem>>, vector<1x1x32xf32>
    %150 = vector.shape_cast %149 : vector<1x1x32xf32> to vector<1x32xf32>
    %151 = vector.broadcast %150 : vector<1x32xf32> to vector<16x32xf32>
    %152 = arith.addf %148, %151 : vector<16x32xf32>
    %c0_59 = arith.constant 0 : index
    %c0_60 = arith.constant 0 : index
    %c0_61 = arith.constant 0 : index
    %153 = vector.load %arg10[%c0_59, %c0_60, %c0_61] : memref<1x1x32xf32, #tpu.memory_space<vmem>>, vector<1x1x32xf32>
    %154 = vector.shape_cast %153 : vector<1x1x32xf32> to vector<1x32xf32>
    %c0_62 = arith.constant 0 : index
    %c0_63 = arith.constant 0 : index
    %c0_64 = arith.constant 0 : index
    %155 = vector.load %arg11[%c0_62, %c0_63, %c0_64] : memref<1x1x32xf32, #tpu.memory_space<vmem>>, vector<1x1x32xf32>
    %156 = vector.shape_cast %155 : vector<1x1x32xf32> to vector<1x32xf32>
    %cst_65 = arith.constant dense<0.000000e+00> : vector<16xf32>
    %157 = vector.multi_reduction <add>, %152, %cst_65 [1] : vector<16x32xf32> to vector<16xf32>
    %158 = vector.shape_cast %157 : vector<16xf32> to vector<16x1xf32>
    %cst_66 = arith.constant 3.200000e+01 : f32
    %159 = vector.broadcast %cst_66 : f32 to vector<16x1xf32>
    %160 = arith.divf %158, %159 : vector<16x1xf32>
    %161 = vector.broadcast %160 : vector<16x1xf32> to vector<16x32xf32>
    %162 = arith.subf %152, %161 : vector<16x32xf32>
    %163 = arith.mulf %162, %162 : vector<16x32xf32>
    %cst_67 = arith.constant dense<0.000000e+00> : vector<16xf32>
    %164 = vector.multi_reduction <add>, %163, %cst_67 [1] : vector<16x32xf32> to vector<16xf32>
    %165 = vector.shape_cast %164 : vector<16xf32> to vector<16x1xf32>
    %cst_68 = arith.constant 3.200000e+01 : f32
    %166 = vector.broadcast %cst_68 : f32 to vector<16x1xf32>
    %167 = arith.divf %165, %166 : vector<16x1xf32>
    %cst_69 = arith.constant 9.99999974E-6 : f32
    %168 = vector.broadcast %cst_69 : f32 to vector<16x1xf32>
    %169 = arith.addf %167, %168 : vector<16x1xf32>
    %170 = math.rsqrt %169 : vector<16x1xf32>
    %171 = vector.broadcast %170 : vector<16x1xf32> to vector<16x32xf32>
    %172 = arith.mulf %162, %171 : vector<16x32xf32>
    %173 = vector.broadcast %154 : vector<1x32xf32> to vector<16x32xf32>
    %174 = arith.mulf %172, %173 : vector<16x32xf32>
    %175 = vector.broadcast %156 : vector<1x32xf32> to vector<16x32xf32>
    %176 = arith.addf %174, %175 : vector<16x32xf32>
    %177 = arith.truncf %176 : vector<16x32xf32> to vector<16x32xbf16>
    %c0_70 = arith.constant 0 : index
    %c0_71 = arith.constant 0 : index
    %c0_72 = arith.constant 0 : index
    %178 = vector.load %arg12[%c0_70, %c0_71, %c0_72] : memref<1x32x64xbf16, #tpu.memory_space<vmem>>, vector<1x32x64xbf16>
    %179 = vector.shape_cast %178 : vector<1x32x64xbf16> to vector<32x64xbf16>
    %cst_73 = arith.constant dense<0.000000e+00> : vector<16x64xf32>
    %180 = tpu.matmul %177, %179, %cst_73 {dimension_numbers = #tpu.dot_dimension_numbers<[1], [0], [0], [1], [0, 0, 1, 1], [], []>} : vector<16x32xbf16>, vector<32x64xbf16>, vector<16x64xf32> -> vector<16x64xf32>
    %c0_74 = arith.constant 0 : index
    %c0_75 = arith.constant 0 : index
    %c0_76 = arith.constant 0 : index
    %181 = vector.load %arg13[%c0_74, %c0_75, %c0_76] : memref<1x1x64xf32, #tpu.memory_space<vmem>>, vector<1x1x64xf32>
    %182 = vector.shape_cast %181 : vector<1x1x64xf32> to vector<1x64xf32>
    %183 = vector.broadcast %182 : vector<1x64xf32> to vector<16x64xf32>
    %184 = arith.addf %180, %183 : vector<16x64xf32>
    %185 = arith.mulf %184, %184 : vector<16x64xf32>
    %186 = arith.mulf %184, %185 : vector<16x64xf32>
    %cst_77 = arith.constant 4.471500e-02 : f32
    %187 = vector.broadcast %cst_77 : f32 to vector<16x64xf32>
    %188 = arith.mulf %187, %186 : vector<16x64xf32>
    %189 = arith.addf %184, %188 : vector<16x64xf32>
    %cst_78 = arith.constant 0.797884583 : f32
    %190 = vector.broadcast %cst_78 : f32 to vector<16x64xf32>
    %191 = arith.mulf %190, %189 : vector<16x64xf32>
    %192 = math.tanh %191 : vector<16x64xf32>
    %cst_79 = arith.constant 1.000000e+00 : f32
    %193 = vector.broadcast %cst_79 : f32 to vector<16x64xf32>
    %194 = arith.addf %193, %192 : vector<16x64xf32>
    %cst_80 = arith.constant 5.000000e-01 : f32
    %195 = vector.broadcast %cst_80 : f32 to vector<16x64xf32>
    %196 = arith.mulf %195, %194 : vector<16x64xf32>
    %197 = arith.mulf %184, %196 : vector<16x64xf32>
    %198 = arith.truncf %197 : vector<16x64xf32> to vector<16x64xbf16>
    %c0_81 = arith.constant 0 : index
    %c0_82 = arith.constant 0 : index
    %c0_83 = arith.constant 0 : index
    %199 = vector.load %arg14[%c0_81, %c0_82, %c0_83] : memref<1x64x32xbf16, #tpu.memory_space<vmem>>, vector<1x64x32xbf16>
    %200 = vector.shape_cast %199 : vector<1x64x32xbf16> to vector<64x32xbf16>
    %cst_84 = arith.constant dense<0.000000e+00> : vector<16x32xf32>
    %201 = tpu.matmul %198, %200, %cst_84 {dimension_numbers = #tpu.dot_dimension_numbers<[1], [0], [0], [1], [0, 0, 1, 1], [], []>} : vector<16x64xbf16>, vector<64x32xbf16>, vector<16x32xf32> -> vector<16x32xf32>
    %c0_85 = arith.constant 0 : index
    %c0_86 = arith.constant 0 : index
    %c0_87 = arith.constant 0 : index
    %202 = vector.load %arg15[%c0_85, %c0_86, %c0_87] : memref<1x1x32xf32, #tpu.memory_space<vmem>>, vector<1x1x32xf32>
    %203 = vector.shape_cast %202 : vector<1x1x32xf32> to vector<1x32xf32>
    %204 = vector.broadcast %203 : vector<1x32xf32> to vector<16x32xf32>
    %205 = arith.addf %201, %204 : vector<16x32xf32>
    %206 = arith.addf %152, %205 : vector<16x32xf32>
    %207 = vector.shape_cast %206 : vector<16x32xf32> to vector<2x8x32xf32>
    %c0_88 = arith.constant 0 : index
    %c0_89 = arith.constant 0 : index
    %c0_90 = arith.constant 0 : index
    %208 = vector.load %arg16[%c0_88, %c0_89, %c0_90] : memref<2x8x32xf32, #tpu.memory_space<vmem>>, vector<2x8x32xf32>
    tpu.vector_store %arg16[%c0_88, %c0_89, %c0_90], %207 {strides = array<i32>} : memref<2x8x32xf32, #tpu.memory_space<vmem>>, vector<2x8x32xf32>,
    return
  }
  func.func @transform_0(%arg0: i32, %arg1: i32) -> (i32, i32, i32) {
    %c0_i32 = arith.constant 0 : i32
    %c0_i32_0 = arith.constant 0 : i32
    %c0_i32_1 = arith.constant 0 : i32
    return %arg0, %c0_i32, %c0_i32_0 : i32, i32, i32
  }
  func.func @transform_1(%arg0: i32, %arg1: i32) -> (i32, i32, i32) {
    %c0_i32 = arith.constant 0 : i32
    %c0_i32_0 = arith.constant 0 : i32
    %c0_i32_1 = arith.constant 0 : i32
    return %arg0, %c0_i32, %c0_i32_0 : i32, i32, i32
  }
  func.func @transform_2(%arg0: i32, %arg1: i32) -> (i32, i32, i32) {
    %c0_i32 = arith.constant 0 : i32
    %c0_i32_0 = arith.constant 0 : i32
    %c0_i32_1 = arith.constant 0 : i32
    return %arg1, %c0_i32, %c0_i32_0 : i32, i32, i32
  }
  func.func @transform_3(%arg0: i32, %arg1: i32) -> (i32, i32, i32) {
    %c0_i32 = arith.constant 0 : i32
    %c0_i32_0 = arith.constant 0 : i32
    %c0_i32_1 = arith.constant 0 : i32
    return %arg1, %c0_i32, %c0_i32_0 : i32, i32, i32
  }
  func.func @transform_4(%arg0: i32, %arg1: i32) -> (i32, i32, i32) {
    %c0_i32 = arith.constant 0 : i32
    %c0_i32_0 = arith.constant 0 : i32
    %c0_i32_1 = arith.constant 0 : i32
    return %arg1, %c0_i32, %c0_i32_0 : i32, i32, i32
  }
  func.func @transform_5(%arg0: i32, %arg1: i32) -> (i32, i32, i32) {
    %c0_i32 = arith.constant 0 : i32
    %c0_i32_0 = arith.constant 0 : i32
    %c0_i32_1 = arith.constant 0 : i32
    return %arg1, %c0_i32, %c0_i32_0 : i32, i32, i32
  }
  func.func @transform_6(%arg0: i32, %arg1: i32) -> (i32, i32, i32) {
    %c0_i32 = arith.constant 0 : i32
    %c0_i32_0 = arith.constant 0 : i32
    %c0_i32_1 = arith.constant 0 : i32
    return %arg1, %c0_i32, %c0_i32_0 : i32, i32, i32
  }
  func.func @transform_7(%arg0: i32, %arg1: i32) -> (i32, i32, i32) {
    %c0_i32 = arith.constant 0 : i32
    %c0_i32_0 = arith.constant 0 : i32
    %c0_i32_1 = arith.constant 0 : i32
    return %arg1, %c0_i32, %c0_i32_0 : i32, i32, i32
  }
  func.func @transform_8(%arg0: i32, %arg1: i32) -> (i32, i32, i32) {
    %c0_i32 = arith.constant 0 : i32
    %c0_i32_0 = arith.constant 0 : i32
    %c0_i32_1 = arith.constant 0 : i32
    return %arg1, %c0_i32, %c0_i32_0 : i32, i32, i32
  }
  func.func @transform_9(%arg0: i32, %arg1: i32) -> (i32, i32, i32) {
    %c0_i32 = arith.constant 0 : i32
    %c0_i32_0 = arith.constant 0 : i32
    %c0_i32_1 = arith.constant 0 : i32
    return %arg1, %c0_i32, %c0_i32_0 : i32, i32, i32
  }
  func.func @transform_10(%arg0: i32, %arg1: i32) -> (i32, i32, i32) {
    %c0_i32 = arith.constant 0 : i32
    %c0_i32_0 = arith.constant 0 : i32
    %c0_i32_1 = arith.constant 0 : i32
    return %arg1, %c0_i32, %c0_i32_0 : i32, i32, i32
  }
  func.func @transform_11(%arg0: i32, %arg1: i32) -> (i32, i32, i32) {
    %c0_i32 = arith.constant 0 : i32
    %c0_i32_0 = arith.constant 0 : i32
    %c0_i32_1 = arith.constant 0 : i32
    return %arg1, %c0_i32, %c0_i32_0 : i32, i32, i32
  }
  func.func @transform_12(%arg0: i32, %arg1: i32) -> (i32, i32, i32) {
    %c0_i32 = arith.constant 0 : i32
    %c0_i32_0 = arith.constant 0 : i32
    %c0_i32_1 = arith.constant 0 : i32
    return %arg1, %c0_i32, %c0_i32_0 : i32, i32, i32
  }
  func.func @transform_13(%arg0: i32, %arg1: i32) -> (i32, i32, i32) {
    %c0_i32 = arith.constant 0 : i32
    %c0_i32_0 = arith.constant 0 : i32
    %c0_i32_1 = arith.constant 0 : i32
    return %arg1, %c0_i32, %c0_i32_0 : i32, i32, i32
  }
  func.func @transform_14(%arg0: i32, %arg1: i32) -> (i32, i32, i32) {
    %c0_i32 = arith.constant 0 : i32
    %c0_i32_0 = arith.constant 0 : i32
    %c0_i32_1 = arith.constant 0 : i32
    return %arg0, %c0_i32, %c0_i32_0 : i32, i32, i32
  }
}

</mosaic_0001>

<llo_original>
// kernel: tpu_custom_call.1
$region0: #{tpu_custom_call.1}
  #allocation0 [shape = 'u32[]', space=smem, size = 0x4, offset = 0x4, fixed_abs, tag = 'smem constant byte address 0x4 - core index']
  #allocation1 [shape = 'u32[144,128]{1,0:T(1,128)}', space=vmem, size = 0x12000, scoped, tag = 'internal scratch']
  #allocation2 [shape = 'f32[16,32]{1,0:T(8,128)}', space=vmem, size = 0x2000, scoped, tag = 'scratch operand']
  %s0 = inlined_call_operand.hbm [shape: f32[2,8,32], index: 0, kind: input, shape index: {}]
  %s1 = inlined_call_operand.vmem [shape: f32[2,1,8], index: 1, kind: input, shape index: {}]
  %s2 = inlined_call_operand.vmem [shape: f32[2,1,32], index: 2, kind: input, shape index: {}]
  %s3 = inlined_call_operand.vmem [shape: f32[2,1,32], index: 3, kind: input, shape index: {}]
  %s4 = inlined_call_operand.vmem [shape: bf16[2,32,96], index: 4, kind: input, shape index: {}]
  %s5 = inlined_call_operand.vmem [shape: f32[2,1,96], index: 5, kind: input, shape index: {}]
  %s6 = inlined_call_operand.vmem [shape: bf16[2,32,32], index: 6, kind: input, shape index: {}]
  %s7 = inlined_call_operand.vmem [shape: f32[2,1,32], index: 7, kind: input, shape index: {}]
  %s8 = inlined_call_operand.vmem [shape: f32[2,1,32], index: 8, kind: input, shape index: {}]
  %s9 = inlined_call_operand.hbm [shape: f32[2,1,32], index: 9, kind: input, shape index: {}]
  %s10 = inlined_call_operand.vmem [shape: bf16[2,32,64], index: 10, kind: input, shape index: {}]
  %s11 = inlined_call_operand.hbm [shape: f32[2,1,64], index: 11, kind: input, shape index: {}]
  %s12 = inlined_call_operand.vmem [shape: bf16[2,64,32], index: 12, kind: input, shape index: {}]
  %s13 = inlined_call_operand.vmem [shape: f32[2,1,32], index: 13, kind: input, shape index: {}]
  %s14 = inlined_call_operand.hbm [shape: f32[2,8,32], index: 14, kind: output, shape index: {}]
  %s15 = sld [smem:[#allocation0]]
  $region105: #{tpu_custom_call.1} parent=0
    _
  %s17 = ssub.s32 1, %s15
  %s18 = scalar_select 0, %s17, %s15
  $region1: #{tpu_custom_call.1} parent=0
    #allocation3 [shape = 'u8[8192]{0}', space=vmem, size = 0x2000, scoped, tag = 'input window, operand 0, single buffered']
    #allocation4 [shape = 's32[2]{0}', space=sflag, size = 0x8, scoped, tag = 'scoped memory for tpu_custom_call.1']
    #allocation5 [shape = 's32[2]{0}', space=sflag, size = 0x8, scoped, tag = 'scoped memory for tpu_custom_call.1']
    #allocation6 [shape = 'u8[1024]{0}', space=vmem, size = 0x400, scoped, tag = 'input window, operand 9']
    #allocation7 [shape = 's32[2]{0}', space=sflag, size = 0x8, scoped, tag = 'scoped memory for tpu_custom_call.1']
    #allocation8 [shape = 'u8[1024]{0}', space=vmem, size = 0x400, scoped, tag = 'input window, operand 11']
    #allocation9 [shape = 'u8[8192]{0}', space=vmem, size = 0x2000, scoped, tag = 'output window, operand 0, single buffered']
    %19 = vsyncpa [#allocation4], 0
    %20 = vsyncpa [#allocation7], 0
    %s21 = scalar_lea.sflag [#allocation7], 1
    %22 = vsyncpa %s21, 0
    %23 = vsyncpa [#allocation5], 0
    loop: start=0, step=1, limit=4
    $region2: #{tpu_custom_call.1} parent=1 // loop_pre_header
      _
    $region3: #{tpu_custom_call.1} parent=1 // loop_header
      %s25 = sphi 0, %s29
      %p26 = scmp.ge.s32.totalorder %s25, 4
      %s32 = sphi 0, %s44
      %s33 = sphi 0, %s40
      %s34 = sphi 0, %s32
      %s35 = sphi 0, %s33
      %s36 = sphi 0, %s34
      %s37 = sphi 0, %s35
      %s47 = sphi 0, %s49
      %s50 = sphi 0, %s47
      %s51 = sphi 0, %s50
      %s67 = sphi 0, %s51
      %s73 = sphi 0, %s75
      %s76 = sphi 0, %s73
      %s77 = sphi 0, %s76
      %s93 = sphi 0, %s77
      %s99 = sphi 0, %s101
      %s102 = sphi 0, %s99
      %s103 = sphi 0, %s102
      %s119 = sphi 0, %s103
      %s125 = sphi 0, %s127
      %s128 = sphi 0, %s125
      %s129 = sphi 0, %s128
      %s145 = sphi 0, %s129
      %s151 = sphi 0, %s153
      %s154 = sphi 0, %s151
      %s155 = sphi 0, %s154
      %s171 = sphi 0, %s155
      %s177 = sphi 0, %s179
      %s180 = sphi 0, %s177
      %s181 = sphi 0, %s180
      %s197 = sphi 0, %s181
      %s203 = sphi 0, %s205
      %s206 = sphi 0, %s203
      %s207 = sphi 0, %s206
      %s223 = sphi 0, %s207
      %s229 = sphi 0, %s231
      %s232 = sphi 0, %s229
      %s233 = sphi 0, %s232
      %s249 = sphi 0, %s233
      %s255 = sphi 0, %s257
      %s258 = sphi 0, %s255
      %s259 = sphi 0, %s258
      %s275 = sphi 0, %s259
      %s281 = sphi 0, %s283
      %s284 = sphi 0, %s281
      %s285 = sphi 0, %s284
      %s301 = sphi 0, %s285
      %s307 = sphi 0, %s309
      %s310 = sphi 0, %s307
      %s311 = sphi 0, %s310
      %s327 = sphi 0, %s311
      %s333 = sphi 0, %s335
      %s336 = sphi 0, %s333
      %s337 = sphi 0, %s336
      %s353 = sphi 0, %s337
      %s359 = sphi 0, %s361
      %s362 = sphi 0, %s359
      %s363 = sphi 0, %s362
      %s379 = sphi 0, %s363
      %s385 = sphi 0, %s387
      %s388 = sphi 0, %s385
      %s389 = sphi 0, %s388
      %s405 = sphi 0, %s389
      %s411 = sphi 0, %s413
      %s414 = sphi 0, %s411
      %s415 = sphi 0, %s414
      %s431 = sphi 0, %s415
    $region4: #{tpu_custom_call.1} parent=1 // loop_header_branch
      %28 = sbr.rel (%p26) target = $region8
    $region5: #{tpu_custom_call.1} parent=1 // loop_body
      %s30 = ssub.s32 %s25, 1
      %s31 = ssub.s32 %s25, 2
      %s38 = sadd.s32 1, %s33
      %p39 = scmp.ge.s32.totalorder %s38, 2
      %s40 = scalar_select %p39, 0, %s38
      %s41 = sadd.s32 1, %s32
      %s42 = scalar_select %p39, %s41, %s32
      %p43 = scmp.ge.s32.totalorder %s42, 1
      %s44 = scalar_select %p43, 0, %s42
      %s45 = ssub.s32 %s32, %s44
      %p46 = scmp.eq.s32.totalorder %s45, 0
      %s48 = sadd.s32 %s47, 1
      %s49 = scalar_select %p46, %s47, %s48
      %p52 = pneg %p46
      %p53 = scmp.eq.s32.totalorder %s25, 1
      %p54 = por %p52, %p53
      %p55 = scmp.ne.s32.totalorder %s47, %s50
      %p56 = scmp.eq.s32.totalorder %s25, 0
      %p57 = por %p55, %p56
      %p58 = scmp.ne.s32.totalorder %s47, %s50
      %p59 = scmp.eq.s32.totalorder %s30, 1
      %p60 = por %p58, %p59
      %p61 = scmp.ne.s32.totalorder %s50, %s51
      %p62 = scmp.eq.s32.totalorder %s30, 0
      %p63 = por %p61, %p62
      %p64 = scmp.ne.s32.totalorder %s50, %s51
      %p65 = scmp.eq.s32.totalorder %s31, 1
      %p66 = por %p64, %p65
      %p68 = scmp.ne.s32.totalorder %s51, %s67
      %p69 = scmp.eq.s32.totalorder %s31, 0
      %p70 = por %p68, %p69
      %s71 = ssub.s32 %s32, %s44
      %p72 = scmp.eq.s32.totalorder %s71, 0
      %s74 = sadd.s32 %s73, 1
      %s75 = scalar_select %p72, %s73, %s74
      %p78 = pneg %p72
      %p79 = scmp.eq.s32.totalorder %s25, 1
      %p80 = por %p78, %p79
      %p81 = scmp.ne.s32.totalorder %s73, %s76
      %p82 = scmp.eq.s32.totalorder %s25, 0
      %p83 = por %p81, %p82
      %p84 = scmp.ne.s32.totalorder %s73, %s76
      %p85 = scmp.eq.s32.totalorder %s30, 1
      %p86 = por %p84, %p85
      %p87 = scmp.ne.s32.totalorder %s76, %s77
      %p88 = scmp.eq.s32.totalorder %s30, 0
      %p89 = por %p87, %p88
      %p90 = scmp.ne.s32.totalorder %s76, %s77
      %p91 = scmp.eq.s32.totalorder %s31, 1
      %p92 = por %p90, %p91
      %p94 = scmp.ne.s32.totalorder %s77, %s93
      %p95 = scmp.eq.s32.totalorder %s31, 0
      %p96 = por %p94, %p95
      %s97 = ssub.s32 %s33, %s40
      %p98 = scmp.eq.s32.totalorder %s97, 0
      %s100 = sadd.s32 %s99, 1
      %s101 = scalar_select %p98, %s99, %s100
      %p104 = pneg %p98
      %p105 = scmp.eq.s32.totalorder %s25, 1
      %p106 = por %p104, %p105
      %p107 = scmp.ne.s32.totalorder %s99, %s102
      %p108 = scmp.eq.s32.totalorder %s25, 0
      %p109 = por %p107, %p108
      %p110 = scmp.ne.s32.totalorder %s99, %s102
      %p111 = scmp.eq.s32.totalorder %s30, 1
      %p112 = por %p110, %p111
      %p113 = scmp.ne.s32.totalorder %s102, %s103
      %p114 = scmp.eq.s32.totalorder %s30, 0
      %p115 = por %p113, %p114
      %p116 = scmp.ne.s32.totalorder %s102, %s103
      %p117 = scmp.eq.s32.totalorder %s31, 1
      %p118 = por %p116, %p117
      %p120 = scmp.ne.s32.totalorder %s103, %s119
      %p121 = scmp.eq.s32.totalorder %s31, 0
      %p122 = por %p120, %p121
      %s123 = ssub.s32 %s33, %s40
      %p124 = scmp.eq.s32.totalorder %s123, 0
      %s126 = sadd.s32 %s125, 1
      %s127 = scalar_select %p124, %s125, %s126
      %p130 = pneg %p124
      %p131 = scmp.eq.s32.totalorder %s25, 1
      %p132 = por %p130, %p131
      %p133 = scmp.ne.s32.totalorder %s125, %s128
      %p134 = scmp.eq.s32.totalorder %s25, 0
      %p135 = por %p133, %p134
      %p136 = scmp.ne.s32.totalorder %s125, %s128
      %p137 = scmp.eq.s32.totalorder %s30, 1
      %p138 = por %p136, %p137
      %p139 = scmp.ne.s32.totalorder %s128, %s129
      %p140 = scmp.eq.s32.totalorder %s30, 0
      %p141 = por %p139, %p140
      %p142 = scmp.ne.s32.totalorder %s128, %s129
      %p143 = scmp.eq.s32.totalorder %s31, 1
      %p144 = por %p142, %p143
      %p146 = scmp.ne.s32.totalorder %s129, %s145
      %p147 = scmp.eq.s32.totalorder %s31, 0
      %p148 = por %p146, %p147
      %s149 = ssub.s32 %s33, %s40
      %p150 = scmp.eq.s32.totalorder %s149, 0
      %s152 = sadd.s32 %s151, 1
      %s153 = scalar_select %p150, %s151, %s152
      %p156 = pneg %p150
      %p157 = scmp.eq.s32.totalorder %s25, 1
      %p158 = por %p156, %p157
      %p159 = scmp.ne.s32.totalorder %s151, %s154
      %p160 = scmp.eq.s32.totalorder %s25, 0
      %p161 = por %p159, %p160
      %p162 = scmp.ne.s32.totalorder %s151, %s154
      %p163 = scmp.eq.s32.totalorder %s30, 1
      %p164 = por %p162, %p163
      %p165 = scmp.ne.s32.totalorder %s154, %s155
      %p166 = scmp.eq.s32.totalorder %s30, 0
      %p167 = por %p165, %p166
      %p168 = scmp.ne.s32.totalorder %s154, %s155
      %p169 = scmp.eq.s32.totalorder %s31, 1
      %p170 = por %p168, %p169
      %p172 = scmp.ne.s32.totalorder %s155, %s171
      %p173 = scmp.eq.s32.totalorder %s31, 0
      %p174 = por %p172, %p173
      %s175 = ssub.s32 %s33, %s40
      %p176 = scmp.eq.s32.totalorder %s175, 0
      %s178 = sadd.s32 %s177, 1
      %s179 = scalar_select %p176, %s177, %s178
      %p182 = pneg %p176
      %p183 = scmp.eq.s32.totalorder %s25, 1
      %p184 = por %p182, %p183
      %p185 = scmp.ne.s32.totalorder %s177, %s180
      %p186 = scmp.eq.s32.totalorder %s25, 0
      %p187 = por %p185, %p186
      %p188 = scmp.ne.s32.totalorder %s177, %s180
      %p189 = scmp.eq.s32.totalorder %s30, 1
      %p190 = por %p188, %p189
      %p191 = scmp.ne.s32.totalorder %s180, %s181
      %p192 = scmp.eq.s32.totalorder %s30, 0
      %p193 = por %p191, %p192
      %p194 = scmp.ne.s32.totalorder %s180, %s181
      %p195 = scmp.eq.s32.totalorder %s31, 1
      %p196 = por %p194, %p195
      %p198 = scmp.ne.s32.totalorder %s181, %s197
      %p199 = scmp.eq.s32.totalorder %s31, 0
      %p200 = por %p198, %p199
      %s201 = ssub.s32 %s33, %s40
      %p202 = scmp.eq.s32.totalorder %s201, 0
      %s204 = sadd.s32 %s203, 1
      %s205 = scalar_select %p202, %s203, %s204
      %p208 = pneg %p202
      %p209 = scmp.eq.s32.totalorder %s25, 1
      %p210 = por %p208, %p209
      %p211 = scmp.ne.s32.totalorder %s203, %s206
      %p212 = scmp.eq.s32.totalorder %s25, 0
      %p213 = por %p211, %p212
      %p214 = scmp.ne.s32.totalorder %s203, %s206
      %p215 = scmp.eq.s32.totalorder %s30, 1
      %p216 = por %p214, %p215
      %p217 = scmp.ne.s32.totalorder %s206, %s207
      %p218 = scmp.eq.s32.totalorder %s30, 0
      %p219 = por %p217, %p218
      %p220 = scmp.ne.s32.totalorder %s206, %s207
      %p221 = scmp.eq.s32.totalorder %s31, 1
      %p222 = por %p220, %p221
      %p224 = scmp.ne.s32.totalorder %s207, %s223
      %p225 = scmp.eq.s32.totalorder %s31, 0
      %p226 = por %p224, %p225
      %s227 = ssub.s32 %s33, %s40
      %p228 = scmp.eq.s32.totalorder %s227, 0
      %s230 = sadd.s32 %s229, 1
      %s231 = scalar_select %p228, %s229, %s230
      %p234 = pneg %p228
      %p235 = scmp.eq.s32.totalorder %s25, 1
      %p236 = por %p234, %p235
      %p237 = scmp.ne.s32.totalorder %s229, %s232
      %p238 = scmp.eq.s32.totalorder %s25, 0
      %p239 = por %p237, %p238
      %p240 = scmp.ne.s32.totalorder %s229, %s232
      %p241 = scmp.eq.s32.totalorder %s30, 1
      %p242 = por %p240, %p241
      %p243 = scmp.ne.s32.totalorder %s232, %s233
      %p244 = scmp.eq.s32.totalorder %s30, 0
      %p245 = por %p243, %p244
      %p246 = scmp.ne.s32.totalorder %s232, %s233
      %p247 = scmp.eq.s32.totalorder %s31, 1
      %p248 = por %p246, %p247
      %p250 = scmp.ne.s32.totalorder %s233, %s249
      %p251 = scmp.eq.s32.totalorder %s31, 0
      %p252 = por %p250, %p251
      %s253 = ssub.s32 %s33, %s40
      %p254 = scmp.eq.s32.totalorder %s253, 0
      %s256 = sadd.s32 %s255, 1
      %s257 = scalar_select %p254, %s255, %s256
      %p260 = pneg %p254
      %p261 = scmp.eq.s32.totalorder %s25, 1
      %p262 = por %p260, %p261
      %p263 = scmp.ne.s32.totalorder %s255, %s258
      %p264 = scmp.eq.s32.totalorder %s25, 0
      %p265 = por %p263, %p264
      %p266 = scmp.ne.s32.totalorder %s255, %s258
      %p267 = scmp.eq.s32.totalorder %s30, 1
      %p268 = por %p266, %p267
      %p269 = scmp.ne.s32.totalorder %s258, %s259
      %p270 = scmp.eq.s32.totalorder %s30, 0
      %p271 = por %p269, %p270
      %p272 = scmp.ne.s32.totalorder %s258, %s259
      %p273 = scmp.eq.s32.totalorder %s31, 1
      %p274 = por %p272, %p273
      %p276 = scmp.ne.s32.totalorder %s259, %s275
      %p277 = scmp.eq.s32.totalorder %s31, 0
      %p278 = por %p276, %p277
      %s279 = ssub.s32 %s33, %s40
      %p280 = scmp.eq.s32.totalorder %s279, 0
      %s282 = sadd.s32 %s281, 1
      %s283 = scalar_select %p280, %s281, %s282
      %p286 = pneg %p280
      %p287 = scmp.eq.s32.totalorder %s25, 1
      %p288 = por %p286, %p287
      %p289 = scmp.ne.s32.totalorder %s281, %s284
      %p290 = scmp.eq.s32.totalorder %s25, 0
      %p291 = por %p289, %p290
      %p292 = scmp.ne.s32.totalorder %s281, %s284
      %p293 = scmp.eq.s32.totalorder %s30, 1
      %p294 = por %p292, %p293
      %p295 = scmp.ne.s32.totalorder %s284, %s285
      %p296 = scmp.eq.s32.totalorder %s30, 0
      %p297 = por %p295, %p296
      %p298 = scmp.ne.s32.totalorder %s284, %s285
      %p299 = scmp.eq.s32.totalorder %s31, 1
      %p300 = por %p298, %p299
      %p302 = scmp.ne.s32.totalorder %s285, %s301
      %p303 = scmp.eq.s32.totalorder %s31, 0
      %p304 = por %p302, %p303
      %s305 = ssub.s32 %s33, %s40
      %p306 = scmp.eq.s32.totalorder %s305, 0
      %s308 = sadd.s32 %s307, 1
      %s309 = scalar_select %p306, %s307, %s308
      %p312 = pneg %p306
      %p313 = scmp.eq.s32.totalorder %s25, 1
      %p314 = por %p312, %p313
      %p315 = scmp.ne.s32.totalorder %s307, %s310
      %p316 = scmp.eq.s32.totalorder %s25, 0
      %p317 = por %p315, %p316
      %p318 = scmp.ne.s32.totalorder %s307, %s310
      %p319 = scmp.eq.s32.totalorder %s30, 1
      %p320 = por %p318, %p319
      %p321 = scmp.ne.s32.totalorder %s310, %s311
      %p322 = scmp.eq.s32.totalorder %s30, 0
      %p323 = por %p321, %p322
      %p324 = scmp.ne.s32.totalorder %s310, %s311
      %p325 = scmp.eq.s32.totalorder %s31, 1
      %p326 = por %p324, %p325
      %p328 = scmp.ne.s32.totalorder %s311, %s327
      %p329 = scmp.eq.s32.totalorder %s31, 0
      %p330 = por %p328, %p329
      %s331 = ssub.s32 %s33, %s40
      %p332 = scmp.eq.s32.totalorder %s331, 0
      %s334 = sadd.s32 %s333, 1
      %s335 = scalar_select %p332, %s333, %s334
      %p338 = pneg %p332
      %p339 = scmp.eq.s32.totalorder %s25, 1
      %p340 = por %p338, %p339
      %p341 = scmp.ne.s32.totalorder %s333, %s336
      %p342 = scmp.eq.s32.totalorder %s25, 0
      %p343 = por %p341, %p342
      %p344 = scmp.ne.s32.totalorder %s333, %s336
      %p345 = scmp.eq.s32.totalorder %s30, 1
      %p346 = por %p344, %p345
      %p347 = scmp.ne.s32.totalorder %s336, %s337
      %p348 = scmp.eq.s32.totalorder %s30, 0
      %p349 = por %p347, %p348
      %p350 = scmp.ne.s32.totalorder %s336, %s337
      %p351 = scmp.eq.s32.totalorder %s31, 1
      %p352 = por %p350, %p351
      %p354 = scmp.ne.s32.totalorder %s337, %s353
      %p355 = scmp.eq.s32.totalorder %s31, 0
      %p356 = por %p354, %p355
      %s357 = ssub.s32 %s33, %s40
      %p358 = scmp.eq.s32.totalorder %s357, 0
      %s360 = sadd.s32 %s359, 1
      %s361 = scalar_select %p358, %s359, %s360
      %p364 = pneg %p358
      %p365 = scmp.eq.s32.totalorder %s25, 1
      %p366 = por %p364, %p365
      %p367 = scmp.ne.s32.totalorder %s359, %s362
      %p368 = scmp.eq.s32.totalorder %s25, 0
      %p369 = por %p367, %p368
      %p370 = scmp.ne.s32.totalorder %s359, %s362
      %p371 = scmp.eq.s32.totalorder %s30, 1
      %p372 = por %p370, %p371
      %p373 = scmp.ne.s32.totalorder %s362, %s363
      %p374 = scmp.eq.s32.totalorder %s30, 0
      %p375 = por %p373, %p374
      %p376 = scmp.ne.s32.totalorder %s362, %s363
      %p377 = scmp.eq.s32.totalorder %s31, 1
      %p378 = por %p376, %p377
      %p380 = scmp.ne.s32.totalorder %s363, %s379
      %p381 = scmp.eq.s32.totalorder %s31, 0
      %p382 = por %p380, %p381
      %s383 = ssub.s32 %s33, %s40
      %p384 = scmp.eq.s32.totalorder %s383, 0
      %s386 = sadd.s32 %s385, 1
      %s387 = scalar_select %p384, %s385, %s386
      %p390 = pneg %p384
      %p391 = scmp.eq.s32.totalorder %s25, 1
      %p392 = por %p390, %p391
      %p393 = scmp.ne.s32.totalorder %s385, %s388
      %p394 = scmp.eq.s32.totalorder %s25, 0
      %p395 = por %p393, %p394
      %p396 = scmp.ne.s32.totalorder %s385, %s388
      %p397 = scmp.eq.s32.totalorder %s30, 1
      %p398 = por %p396, %p397
      %p399 = scmp.ne.s32.totalorder %s388, %s389
      %p400 = scmp.eq.s32.totalorder %s30, 0
      %p401 = por %p399, %p400
      %p402 = scmp.ne.s32.totalorder %s388, %s389
      %p403 = scmp.eq.s32.totalorder %s31, 1
      %p404 = por %p402, %p403
      %p406 = scmp.ne.s32.totalorder %s389, %s405
      %p407 = scmp.eq.s32.totalorder %s31, 0
      %p408 = por %p406, %p407
      %s409 = ssub.s32 %s32, %s44
      %p410 = scmp.eq.s32.totalorder %s409, 0
      %s412 = sadd.s32 %s411, 1
      %s413 = scalar_select %p410, %s411, %s412
      %p416 = pneg %p410
      %p417 = scmp.eq.s32.totalorder %s25, 1
      %p418 = por %p416, %p417
      %p419 = scmp.ne.s32.totalorder %s411, %s414
      %p420 = scmp.eq.s32.totalorder %s25, 0
      %p421 = por %p419, %p420
      %p422 = scmp.ne.s32.totalorder %s411, %s414
      %p423 = scmp.eq.s32.totalorder %s30, 1
      %p424 = por %p422, %p423
      %p425 = scmp.ne.s32.totalorder %s414, %s415
      %p426 = scmp.eq.s32.totalorder %s30, 0
      %p427 = por %p425, %p426
      %p428 = scmp.ne.s32.totalorder %s414, %s415
      %p429 = scmp.eq.s32.totalorder %s31, 1
      %p430 = por %p428, %p429
      %p432 = scmp.ne.s32.totalorder %s415, %s431
      %p433 = scmp.eq.s32.totalorder %s31, 0
      %p434 = por %p432, %p433
      %p435 = scmp.le.s32.totalorder 1, %s25
      %p436 = scmp.lt.s32.totalorder %s25, 3
      %p437 = pnand %p435, %p436
      %p438 = pneg %p437
      // Predicated region
      $region9: #{tpu_custom_call.1} parent=5 // pred_check
        _
      $region10: #{tpu_custom_call.1} parent=5 // pred_check_branch
        %440 = sbr.rel (%p437) target = $region12
      $region11: #{tpu_custom_call.1} parent=5 // pred_region
        %s441 = ssub.s32 %s25, 1
        // Predicated region
        $region13: #{tpu_custom_call.1} parent=11 // pred_check
          %p442 = pneg %p63
        $region14: #{tpu_custom_call.1} parent=11 // pred_check_branch
          %444 = sbr.rel (%p442) target = $region16
        $region15: #{tpu_custom_call.1} parent=11 // pred_region
          %s445 = smul.u32 2, %s34
          %s447 = ssub.s32 256, 256
          %448 = vsyncadd [#allocation4], %s447
          %s449 = smul.addr %s445, 128
          %s450 = scalar_lea.hbm %s0, %s449
          %s451 = sshll.u32 [#allocation3], 4
          %s452 = int_to_ptr.vmem [resolvable:$true] %s451
          %457 = dma.hbm_to_vmem [thread:$0]  %s450, 256, %s452, [#allocation4], 128, 128, 8
        $region16: #{tpu_custom_call.1} parent=11 // pred_fallthru
          _
        // Predicated region
        $region17: #{tpu_custom_call.1} parent=11 // pred_check
          %p458 = pneg %p89
        $region18: #{tpu_custom_call.1} parent=11 // pred_check_branch
          %460 = sbr.rel (%p458) target = $region20
        $region19: #{tpu_custom_call.1} parent=11 // pred_region
          %s461 = smul.u32 2, %s34
          %p462 = scmp.lt.s32.totalorder %s461, 1
          %s463 = scalar_select %p462, %s461, 1
          %s464 = scalar_lea.vmem %s1, %s463
          %s465 = smul.u32 2, %s34
        $region20: #{tpu_custom_call.1} parent=11 // pred_fallthru
          _
      $region12: #{tpu_custom_call.1} parent=5 // pred_fallthru
        _
      %p466 = scmp.lt.s32.totalorder %s25, 2
      // Predicated region
      $region21: #{tpu_custom_call.1} parent=5 // pred_check
        %p467 = pneg %p466
      $region22: #{tpu_custom_call.1} parent=5 // pred_check_branch
        %469 = sbr.rel (%p467) target = $region24
      $region23: #{tpu_custom_call.1} parent=5 // pred_region
        // Predicated region
        $region25: #{tpu_custom_call.1} parent=23 // pred_check
          %p470 = pneg %p109
        $region26: #{tpu_custom_call.1} parent=23 // pred_check_branch
          %472 = sbr.rel (%p470) target = $region28
        $region27: #{tpu_custom_call.1} parent=23 // pred_region
          %p473 = scmp.lt.s32.totalorder %s33, 1
          %s474 = scalar_select %p473, %s33, 1
          %s475 = scalar_lea.vmem %s2, %s474
        $region28: #{tpu_custom_call.1} parent=23 // pred_fallthru
          _
        // Predicated region
        $region29: #{tpu_custom_call.1} parent=23 // pred_check
          %p476 = pneg %p135
        $region30: #{tpu_custom_call.1} parent=23 // pred_check_branch
          %478 = sbr.rel (%p476) target = $region32
        $region31: #{tpu_custom_call.1} parent=23 // pred_region
          %p479 = scmp.lt.s32.totalorder %s33, 1
          %s480 = scalar_select %p479, %s33, 1
          %s481 = scalar_lea.vmem %s3, %s480
        $region32: #{tpu_custom_call.1} parent=23 // pred_fallthru
          _
        // Predicated region
        $region33: #{tpu_custom_call.1} parent=23 // pred_check
          %p482 = pneg %p161
        $region34: #{tpu_custom_call.1} parent=23 // pred_check_branch
          %484 = sbr.rel (%p482) target = $region36
        $region35: #{tpu_custom_call.1} parent=23 // pred_region
          %p485 = scmp.lt.s32.totalorder %s33, 1
          %s486 = scalar_select %p485, %s33, 1
          %s487 = smul.addr %s486, 4
          %s488 = smul.addr %s487, 4
          %s489 = scalar_lea.vmem %s4, %s488
        $region36: #{tpu_custom_call.1} parent=23 // pred_fallthru
          _
        // Predicated region
        $region37: #{tpu_custom_call.1} parent=23 // pred_check
          %p490 = pneg %p187
        $region38: #{tpu_custom_call.1} parent=23 // pred_check_branch
          %492 = sbr.rel (%p490) target = $region40
        $region39: #{tpu_custom_call.1} parent=23 // pred_region
          %p493 = scmp.lt.s32.totalorder %s33, 1
          %s494 = scalar_select %p493, %s33, 1
          %s495 = scalar_lea.vmem %s5, %s494
        $region40: #{tpu_custom_call.1} parent=23 // pred_fallthru
          _
        // Predicated region
        $region41: #{tpu_custom_call.1} parent=23 // pred_check
          %p496 = pneg %p213
        $region42: #{tpu_custom_call.1} parent=23 // pred_check_branch
          %498 = sbr.rel (%p496) target = $region44
        $region43: #{tpu_custom_call.1} parent=23 // pred_region
          %p499 = scmp.lt.s32.totalorder %s33, 1
          %s500 = scalar_select %p499, %s33, 1
          %s501 = smul.addr %s500, 4
          %s502 = smul.addr %s501, 4
          %s503 = scalar_lea.vmem %s6, %s502
        $region44: #{tpu_custom_call.1} parent=23 // pred_fallthru
          _
        // Predicated region
        $region45: #{tpu_custom_call.1} parent=23 // pred_check
          %p504 = pneg %p239
        $region46: #{tpu_custom_call.1} parent=23 // pred_check_branch
          %506 = sbr.rel (%p504) target = $region48
        $region47: #{tpu_custom_call.1} parent=23 // pred_region
          %p507 = scmp.lt.s32.totalorder %s33, 1
          %s508 = scalar_select %p507, %s33, 1
          %s509 = scalar_lea.vmem %s7, %s508
        $region48: #{tpu_custom_call.1} parent=23 // pred_fallthru
          _
        // Predicated region
        $region49: #{tpu_custom_call.1} parent=23 // pred_check
          %p510 = pneg %p265
        $region50: #{tpu_custom_call.1} parent=23 // pred_check_branch
          %512 = sbr.rel (%p510) target = $region52
        $region51: #{tpu_custom_call.1} parent=23 // pred_region
          %p513 = scmp.lt.s32.totalorder %s33, 1
          %s514 = scalar_select %p513, %s33, 1
          %s515 = scalar_lea.vmem %s8, %s514
        $region52: #{tpu_custom_call.1} parent=23 // pred_fallthru
          _
        // Predicated region
        $region53: #{tpu_custom_call.1} parent=23 // pred_check
          %p516 = pneg %p291
        $region54: #{tpu_custom_call.1} parent=23 // pred_check_branch
          %518 = sbr.rel (%p516) target = $region56
        $region55: #{tpu_custom_call.1} parent=23 // pred_region
          %s519 = sand.u32 %s25, 1
          %s520 = scalar_lea.sflag [#allocation7], %s519
          %s521 = sand.u32 %s281, 1
          %s522 = scalar_lea.vmem [#allocation6], %s521
          %s524 = ssub.s32 16, 16
          %525 = vsyncadd %s520, %s524
          %s526 = smul.addr %s33, 16
          %s527 = scalar_lea.hbm %s9, %s526
          %s529 = sshll.u32 %s522, 4
          %s530 = int_to_ptr.vmem [resolvable:$true] %s529
          %532 = dma.hbm_to_vmem [thread:$0]  %s527, 16, %s530, %s520
        $region56: #{tpu_custom_call.1} parent=23 // pred_fallthru
          _
        // Predicated region
        $region57: #{tpu_custom_call.1} parent=23 // pred_check
          %p533 = pneg %p317
        $region58: #{tpu_custom_call.1} parent=23 // pred_check_branch
          %535 = sbr.rel (%p533) target = $region60
        $region59: #{tpu_custom_call.1} parent=23 // pred_region
          %p536 = scmp.lt.s32.totalorder %s33, 1
          %s537 = scalar_select %p536, %s33, 1
          %s538 = smul.addr %s537, 4
          %s539 = smul.addr %s538, 4
          %s540 = scalar_lea.vmem %s10, %s539
        $region60: #{tpu_custom_call.1} parent=23 // pred_fallthru
          _
        // Predicated region
        $region61: #{tpu_custom_call.1} parent=23 // pred_check
          %p541 = pneg %p343
        $region62: #{tpu_custom_call.1} parent=23 // pred_check_branch
          %543 = sbr.rel (%p541) target = $region64
        $region63: #{tpu_custom_call.1} parent=23 // pred_region
          %s544 = sand.u32 %s25, 1
          %s545 = scalar_lea.sflag [#allocation7], %s544
          %s546 = sand.u32 %s333, 1
          %s547 = scalar_lea.vmem [#allocation8], %s546
          %s549 = ssub.s32 16, 16
          %550 = vsyncadd %s545, %s549
          %s551 = smul.addr %s33, 16
          %s552 = scalar_lea.hbm %s11, %s551
          %s554 = sshll.u32 %s547, 4
          %s555 = int_to_ptr.vmem [resolvable:$true] %s554
          %557 = dma.hbm_to_vmem [thread:$0]  %s552, 16, %s555, %s545
        $region64: #{tpu_custom_call.1} parent=23 // pred_fallthru
          _
        // Predicated region
        $region65: #{tpu_custom_call.1} parent=23 // pred_check
          %p558 = pneg %p369
        $region66: #{tpu_custom_call.1} parent=23 // pred_check_branch
          %560 = sbr.rel (%p558) target = $region68
        $region67: #{tpu_custom_call.1} parent=23 // pred_region
          %p561 = scmp.lt.s32.totalorder %s33, 1
          %s562 = scalar_select %p561, %s33, 1
          %s563 = smul.addr %s562, 8
          %s564 = smul.addr %s563, 4
          %s565 = scalar_lea.vmem %s12, %s564
        $region68: #{tpu_custom_call.1} parent=23 // pred_fallthru
          _
        // Predicated region
        $region69: #{tpu_custom_call.1} parent=23 // pred_check
          %p566 = pneg %p395
        $region70: #{tpu_custom_call.1} parent=23 // pred_check_branch
          %568 = sbr.rel (%p566) target = $region72
        $region71: #{tpu_custom_call.1} parent=23 // pred_region
          %p569 = scmp.lt.s32.totalorder %s33, 1
          %s570 = scalar_select %p569, %s33, 1
          %s571 = scalar_lea.vmem %s13, %s570
        $region72: #{tpu_custom_call.1} parent=23 // pred_fallthru
          _
      $region24: #{tpu_custom_call.1} parent=5 // pred_fallthru
        _
      %p572 = scmp.le.s32.totalorder 1, %s25
      %p573 = scmp.lt.s32.totalorder %s25, 3
      %p574 = pnand %p572, %p573
      %p575 = pneg %p574
      // Predicated region
      $region73: #{tpu_custom_call.1} parent=5 // pred_check
        _
      $region74: #{tpu_custom_call.1} parent=5 // pred_check_branch
        %577 = sbr.rel (%p574) target = $region76
      $region75: #{tpu_custom_call.1} parent=5 // pred_region
        %s578 = ssub.s32 %s25, 1
        // Predicated region
        $region77: #{tpu_custom_call.1} parent=75 // pred_check
          %p579 = pneg %p63
        $region78: #{tpu_custom_call.1} parent=75 // pred_check_branch
          %581 = sbr.rel (%p579) target = $region80
        $region79: #{tpu_custom_call.1} parent=75 // pred_region
          %582 = dma.done [#allocation4], 256
        $region80: #{tpu_custom_call.1} parent=75 // pred_fallthru
          _
        %s583 = sand.u32 %s30, 1
        %s584 = scalar_lea.sflag [#allocation7], %s583
        %s585 = sand.u32 %s284, 1
        %s586 = scalar_lea.vmem [#allocation6], %s585
        // Predicated region
        $region81: #{tpu_custom_call.1} parent=75 // pred_check
          %p587 = pneg %p297
        $region82: #{tpu_custom_call.1} parent=75 // pred_check_branch
          %589 = sbr.rel (%p587) target = $region84
        $region83: #{tpu_custom_call.1} parent=75 // pred_region
          %590 = dma.done %s584, 16
        $region84: #{tpu_custom_call.1} parent=75 // pred_fallthru
          _
        %s591 = sand.u32 %s30, 1
        %s592 = scalar_lea.sflag [#allocation7], %s591
        %s593 = sand.u32 %s336, 1
        %s594 = scalar_lea.vmem [#allocation8], %s593
        // Predicated region
        $region85: #{tpu_custom_call.1} parent=75 // pred_check
          %p595 = pneg %p349
        $region86: #{tpu_custom_call.1} parent=75 // pred_check_branch
          %597 = sbr.rel (%p595) target = $region88
        $region87: #{tpu_custom_call.1} parent=75 // pred_region
          %598 = dma.done %s592, 16
        $region88: #{tpu_custom_call.1} parent=75 // pred_fallthru
          _
        %p599 = pneg %p63
        %p600 = pneg %p60
        %s601 = smul.u32 2, %s34
        %p602 = scmp.lt.s32.totalorder %s601, 1
        %s603 = scalar_select %p602, %s601, 1
        %s604 = scalar_lea.vmem %s1, %s603
        %p605 = pneg %p89
        %p606 = pneg %p86
        %p607 = scmp.lt.s32.totalorder %s35, 1
        %s608 = scalar_select %p607, %s35, 1
        %s609 = scalar_lea.vmem %s2, %s608
        %p610 = pneg %p115
        %p611 = pneg %p112
        %p612 = scmp.lt.s32.totalorder %s35, 1
        %s613 = scalar_select %p612, %s35, 1
        %s614 = scalar_lea.vmem %s3, %s613
        %p615 = pneg %p141
        %p616 = pneg %p138
        %p617 = scmp.lt.s32.totalorder %s35, 1
        %s618 = scalar_select %p617, %s35, 1
        %s619 = smul.addr %s618, 4
        %s620 = smul.addr %s619, 4
        %s621 = scalar_lea.vmem %s4, %s620
        %p622 = pneg %p167
        %p623 = pneg %p164
        %p624 = scmp.lt.s32.totalorder %s35, 1
        %s625 = scalar_select %p624, %s35, 1
        %s626 = scalar_lea.vmem %s5, %s625
        %p627 = pneg %p193
        %p628 = pneg %p190
        %p629 = scmp.lt.s32.totalorder %s35, 1
        %s630 = scalar_select %p629, %s35, 1
        %s631 = smul.addr %s630, 4
        %s632 = smul.addr %s631, 4
        %s633 = scalar_lea.vmem %s6, %s632
        %p634 = pneg %p219
        %p635 = pneg %p216
        %p636 = scmp.lt.s32.totalorder %s35, 1
        %s637 = scalar_select %p636, %s35, 1
        %s638 = scalar_lea.vmem %s7, %s637
        %p639 = pneg %p245
        %p640 = pneg %p242
        %p641 = scmp.lt.s32.totalorder %s35, 1
        %s642 = scalar_select %p641, %s35, 1
        %s643 = scalar_lea.vmem %s8, %s642
        %p644 = pneg %p271
        %p645 = pneg %p268
        %s646 = sand.u32 %s30, 1
        %s647 = scalar_lea.sflag [#allocation7], %s646
        %s648 = sand.u32 %s284, 1
        %s649 = scalar_lea.vmem [#allocation6], %s648
        %p650 = pneg %p297
        %p651 = pneg %p294
        %p652 = scmp.lt.s32.totalorder %s35, 1
        %s653 = scalar_select %p652, %s35, 1
        %s654 = smul.addr %s653, 4
        %s655 = smul.addr %s654, 4
        %s656 = scalar_lea.vmem %s10, %s655
        %p657 = pneg %p323
        %p658 = pneg %p320
        %s659 = sand.u32 %s30, 1
        %s660 = scalar_lea.sflag [#allocation7], %s659
        %s661 = sand.u32 %s336, 1
        %s662 = scalar_lea.vmem [#allocation8], %s661
        %p663 = pneg %p349
        %p664 = pneg %p346
        %p665 = scmp.lt.s32.totalorder %s35, 1
        %s666 = scalar_select %p665, %s35, 1
        %s667 = smul.addr %s666, 8
        %s668 = smul.addr %s667, 4
        %s669 = scalar_lea.vmem %s12, %s668
        %p670 = pneg %p375
        %p671 = pneg %p372
        %p672 = scmp.lt.s32.totalorder %s35, 1
        %s673 = scalar_select %p672, %s35, 1
        %s674 = scalar_lea.vmem %s13, %s673
        %p675 = pneg %p401
        %p676 = pneg %p398
        %p677 = pneg %p427
        %p678 = pneg %p424
        %s679 = smul.u32 2, %s34
        %s680 = smul.u32 2, %s34
        %p681 = scmp.lt.s32.totalorder %s680, 1
        %s682 = scalar_select %p681, %s680, 1
        %s683 = scalar_lea.vmem %s1, %s682
        %s684 = smul.u32 2, %s34
        %p685 = scmp.lt.s32.totalorder %s35, 1
        %s686 = scalar_select %p685, %s35, 1
        %s687 = scalar_lea.vmem %s2, %s686
        %p688 = scmp.lt.s32.totalorder %s35, 1
        %s689 = scalar_select %p688, %s35, 1
        %s690 = scalar_lea.vmem %s3, %s689
        %p691 = scmp.lt.s32.totalorder %s35, 1
        %s692 = scalar_select %p691, %s35, 1
        %s693 = smul.addr %s692, 4
        %s694 = smul.addr %s693, 4
        %s695 = scalar_lea.vmem %s4, %s694
        %p696 = scmp.lt.s32.totalorder %s35, 1
        %s697 = scalar_select %p696, %s35, 1
        %s698 = scalar_lea.vmem %s5, %s697
        %p699 = scmp.lt.s32.totalorder %s35, 1
        %s700 = scalar_select %p699, %s35, 1
        %s701 = smul.addr %s700, 4
        %s702 = smul.addr %s701, 4
        %s703 = scalar_lea.vmem %s6, %s702
        %p704 = scmp.lt.s32.totalorder %s35, 1
        %s705 = scalar_select %p704, %s35, 1
        %s706 = scalar_lea.vmem %s7, %s705
        %p707 = scmp.lt.s32.totalorder %s35, 1
        %s708 = scalar_select %p707, %s35, 1
        %s709 = scalar_lea.vmem %s8, %s708
        %p710 = scmp.lt.s32.totalorder %s35, 1
        %s711 = scalar_select %p710, %s35, 1
        %s712 = smul.addr %s711, 4
        %s713 = smul.addr %s712, 4
        %s714 = scalar_lea.vmem %s10, %s713
        %p715 = scmp.lt.s32.totalorder %s35, 1
        %s716 = scalar_select %p715, %s35, 1
        %s717 = smul.addr %s716, 8
        %s718 = smul.addr %s717, 4
        %s719 = scalar_lea.vmem %s12, %s718
        %p720 = scmp.lt.s32.totalorder %s35, 1
        %s721 = scalar_select %p720, %s35, 1
        %s722 = scalar_lea.vmem %s13, %s721
        %s723 = smul.u32 2, %s34
        %p725 = scmp.eq.s32.totalorder %s35, 0
        // Predicated region
        $region89: #{tpu_custom_call.1} parent=75 // pred_check
          %p726 = pneg %p725
        $region90: #{tpu_custom_call.1} parent=75 // pred_check_branch
          %728 = sbr.rel (%p726) target = $region92
        $region91: #{tpu_custom_call.1} parent=75 // pred_region
          %v729 = vld [vmem:[#allocation3] sm:$0xff]
          %v730 = vld [vmem:[#allocation3 + $0x8] sm:$0xff]
          %vm731 = vcmask 261120
          %732 = vst.msk [vmem:[#allocation9] sm:$0xff] %vm731, %v729
          %733 = vst.msk [vmem:[#allocation9 + $0x8] sm:$0xff] %vm731, %v730
        $region92: #{tpu_custom_call.1} parent=75 // pred_fallthru
          _
        %v734 = vld [vmem:[#allocation9] sm:$0xff]
        %v735 = vld [vmem:[#allocation9 + $0x8] sm:$0xff]
        %v736 = vld [vmem:[%s683] sm:$0x1]
        %v737 = vld [vmem:[%s683 + $0x1] sm:$0x1]
        %v738 = vsub.f32 %v736, 1.0
        %v739 = vsub.f32 %v737, 1.0
        %v740 = vmul.f32 %v738, 1e+09
        %v741 = vmul.f32 %v739, 1e+09
        %v742 = vld [vmem:[%s687] sm:$0x1]
        %v743 = vld [vmem:[%s690] sm:$0x1]
        %vm744 = vcmask 261120
        %v745 = vsel %vm744, %v734, 0.0
        %746 = vadd.xlane.f32.xlu0 %v745
        %v747 = vpop.xlane.xlu0 %746
        %v748 = vsel %vm744, %v735, 0.0
        %749 = vadd.xlane.f32.xlu0 %v748
        %v750 = vpop.xlane.xlu0 %749
        %v751 = vrcp.pop 32.0
        %v752 = vmul.f32 %v747, %v751
        %v753 = vmul.f32 %v750, %v751
        %v754 = vsub.f32 %v734, %v752
        %v755 = vsub.f32 %v735, %v753
        %v756 = vmul.f32 %v754, %v754
        %v757 = vmul.f32 %v755, %v755
        %v758 = vsel %vm744, %v756, 0.0
        %759 = vadd.xlane.f32.xlu0 %v758
        %v760 = vpop.xlane.xlu0 %759
        %v761 = vsel %vm744, %v757, 0.0
        %762 = vadd.xlane.f32.xlu0 %v761
        %v763 = vpop.xlane.xlu0 %762
        %v764 = vmul.f32 %v760, %v751
        %v765 = vmul.f32 %v763, %v751
        %v766 = vadd.f32 %v764, 1e-05
        %v767 = vadd.f32 %v765, 1e-05
        %v768 = vrsqrt.pop %v766
        %v769 = vrsqrt.pop %v767
        %v770 = vmul.f32 %v754, %v768
        %v771 = vmul.f32 %v755, %v769
        %v773 = vlaneseq
        %v774 = vshrl.u32 %v773, 7
        %v775 = vsub.s32 0, %v774
        %v776 = vrot.slane %v742, %v775
        %v778 = vmul.f32 %v770, %v776
        %v779 = vmul.f32 %v771, %v776
        %v781 = vlaneseq
        %v782 = vshrl.u32 %v781, 7
        %v783 = vsub.s32 0, %v782
        %v784 = vrot.slane %v743, %v783
        %v786 = vadd.f32 %v778, %v784
        %v787 = vadd.f32 %v779, %v784
        %v788 = vpack.c.bf16 %v787, %v786
        %v789 = vld [vmem:[%s695] sm:$0xf]
        %v790 = vld [vmem:[%s695 + $0x4] sm:$0xf]
        %v791 = vld [vmem:[%s695 + $0x8] sm:$0xf]
        %v792 = vld [vmem:[%s695 + $0xc] sm:$0xf]
        %v793 = vld [vmem:[%s698] sm:$0x1]
        %v795 = vlaneseq
        %v796 = vshrl.u32 %v795, 7
        %v797 = vsub.s32 0, %v796
        %v798 = vrot.slane %v793, %v797
        %v804 = vunpack.c.l.b16 %v789
        %v805 = vunpack.c.l.b16 %v790
        %v806 = vunpack.c.l.b16 %v791
        %v807 = vunpack.c.l.b16 %v792
        %v808 = vpack.c.b16 %v805, %v804
        %v809 = vpack.c.b16 %v807, %v806
        %v813 = vsel %vm744, %v788, 0
        %815 = vmatprep.subr.bf16.mxu0 0
        %816 = vmatpush1.bf16.msra.mxu0 %v808
        %817 = vmatprep.subr.bf16.mxu0 0
        %818 = vmatpush1.bf16.msra.mxu0 %v809
        %819 = vmatprep.subr.bf16.mxu0 0
        %820 = vmatpush1.bf16.msra.mxu0 0
        %821 = vmatprep.subr.bf16.mxu0 0
        %822 = vmatpush1.bf16.msra.mxu0 0
        %823 = vmatprep.subr.bf16.mxu0 0
        %824 = vmatpush1.bf16.msra.mxu0 0
        %825 = vmatprep.subr.bf16.mxu0 0
        %826 = vmatpush1.bf16.msra.mxu0 0
        %827 = vmatprep.subr.bf16.mxu0 0
        %828 = vmatpush1.bf16.msra.mxu0 0
        %829 = vmatprep.subr.bf16.mxu0 0
        %830 = vmatpush1.bf16.msra.mxu0 0
        %831 = vmatprep.subr.bf16.mxu0 0
        %832 = vmatpush1.bf16.msra.mxu0 0
        %833 = vmatprep.subr.bf16.mxu0 0
        %834 = vmatpush1.bf16.msra.mxu0 0
        %835 = vmatprep.subr.bf16.mxu0 0
        %836 = vmatpush1.bf16.msra.mxu0 0
        %837 = vmatprep.subr.bf16.mxu0 0
        %838 = vmatpush1.bf16.msra.mxu0 0
        %839 = vmatprep.subr.bf16.mxu0 0
        %840 = vmatpush1.bf16.msra.mxu0 0
        %841 = vmatprep.subr.bf16.mxu0 0
        %842 = vmatpush1.bf16.msra.mxu0 0
        %843 = vmatprep.subr.bf16.mxu0 0
        %844 = vmatpush1.bf16.msra.mxu0 0
        %845 = vmatprep.subr.bf16.mxu0 0
        %846 = vmatpush1.bf16.msra.mxu0 0
        %847 = vmatprep.mubr.bf16.mxu0 0
        %848 = vmatmul.mubr.bf16.gmra.mrb[0].mxu0 %v813
        %v849 = vpop.f32.mrb[0].mxu0
        %v850 = vadd.f32 %v798, %v849
        %v851 = vpop.f32.mrb[0].mxu0
        %v852 = vpop.f32.mrb[0].mxu0
        %v853 = vadd.f32 %v798, %v852
        %v854 = vpop.f32.mrb[0].mxu0
        %855 = vdwg.mxu0
        %v856 = vpack.c.bf16 %v853, %v850
        %v858 = vunpack.c.l.b16 %v856
        %v859 = vunpack.c.h.b16 %v856
        %v860 = vpack.c.b16 %v858, %v858
        %v861 = vpack.c.b16 %v859, %v859
        %862 = vrot.lane.b32.xlu0 %v860, 96
        %v863 = vpop.permute.xlu0 %862
        %vm864 = vcmask 64512
        %v866 = vsel %vm864, %v860, 0
        %v869 = vsel %vm864, %v863, 0
        %871 = vmatprep.subr.bf16.mxu0 0
        %872 = vmatpush1.bf16.xpose.msra.mxu0 %v869
        %873 = vmatprep.subr.bf16.mxu0 0
        %874 = vmatpush1.bf16.xpose.msra.mxu0 0
        %875 = vmatprep.subr.bf16.mxu0 0
        %876 = vmatpush1.bf16.xpose.msra.mxu0 0
        %877 = vmatprep.subr.bf16.mxu0 0
        %878 = vmatpush1.bf16.xpose.msra.mxu0 0
        %879 = vmatprep.subr.bf16.mxu0 0
        %880 = vmatpush1.bf16.xpose.msra.mxu0 0
        %881 = vmatprep.subr.bf16.mxu0 0
        %882 = vmatpush1.bf16.xpose.msra.mxu0 0
        %883 = vmatprep.subr.bf16.mxu0 0
        %884 = vmatpush1.bf16.xpose.msra.mxu0 0
        %885 = vmatprep.subr.bf16.mxu0 0
        %886 = vmatpush1.bf16.xpose.msra.mxu0 0
        %887 = vmatprep.subr.bf16.mxu0 0
        %888 = vmatpush1.bf16.xpose.msra.mxu0 0
        %889 = vmatprep.subr.bf16.mxu0 0
        %890 = vmatpush1.bf16.xpose.msra.mxu0 0
        %891 = vmatprep.subr.bf16.mxu0 0
        %892 = vmatpush1.bf16.xpose.msra.mxu0 0
        %893 = vmatprep.subr.bf16.mxu0 0
        %894 = vmatpush1.bf16.xpose.msra.mxu0 0
        %895 = vmatprep.subr.bf16.mxu0 0
        %896 = vmatpush1.bf16.xpose.msra.mxu0 0
        %897 = vmatprep.subr.bf16.mxu0 0
        %898 = vmatpush1.bf16.xpose.msra.mxu0 0
        %899 = vmatprep.subr.bf16.mxu0 0
        %900 = vmatpush1.bf16.xpose.msra.mxu0 0
        %901 = vmatprep.subr.bf16.mxu0 0
        %902 = vmatpush1.bf16.xpose.msra.mxu0 0
        %903 = vmatprep.mubr.bf16.mxu0 0
        %904 = vmatmul.mubr.bf16.gmra.mrb[0].mxu0 %v866
        %v905 = vpop.f32.mrb[0].mxu0
        %v906 = vadd.f32 0.0, %v905
        %v907 = vpop.f32.mrb[0].mxu0
        %v908 = vpop.f32.mrb[0].mxu0
        %v909 = vpop.f32.mrb[0].mxu0
        %910 = vdwg.mxu0
        %911 = vrot.lane.b32.xlu0 %v861, 96
        %v912 = vpop.permute.xlu0 %911
        %v914 = vsel %vm864, %v861, 0
        %v917 = vsel %vm864, %v912, 0
        %919 = vmatprep.subr.bf16.mxu0 0
        %920 = vmatpush1.bf16.xpose.msra.mxu0 %v917
        %921 = vmatprep.subr.bf16.mxu0 0
        %922 = vmatpush1.bf16.xpose.msra.mxu0 0
        %923 = vmatprep.subr.bf16.mxu0 0
        %924 = vmatpush1.bf16.xpose.msra.mxu0 0
        %925 = vmatprep.subr.bf16.mxu0 0
        %926 = vmatpush1.bf16.xpose.msra.mxu0 0
        %927 = vmatprep.subr.bf16.mxu0 0
        %928 = vmatpush1.bf16.xpose.msra.mxu0 0
        %929 = vmatprep.subr.bf16.mxu0 0
        %930 = vmatpush1.bf16.xpose.msra.mxu0 0
        %931 = vmatprep.subr.bf16.mxu0 0
        %932 = vmatpush1.bf16.xpose.msra.mxu0 0
        %933 = vmatprep.subr.bf16.mxu0 0
        %934 = vmatpush1.bf16.xpose.msra.mxu0 0
        %935 = vmatprep.subr.bf16.mxu0 0
        %936 = vmatpush1.bf16.xpose.msra.mxu0 0
        %937 = vmatprep.subr.bf16.mxu0 0
        %938 = vmatpush1.bf16.xpose.msra.mxu0 0
        %939 = vmatprep.subr.bf16.mxu0 0
        %940 = vmatpush1.bf16.xpose.msra.mxu0 0
        %941 = vmatprep.subr.bf16.mxu0 0
        %942 = vmatpush1.bf16.xpose.msra.mxu0 0
        %943 = vmatprep.subr.bf16.mxu0 0
        %944 = vmatpush1.bf16.xpose.msra.mxu0 0
        %945 = vmatprep.subr.bf16.mxu0 0
        %946 = vmatpush1.bf16.xpose.msra.mxu0 0
        %947 = vmatprep.subr.bf16.mxu0 0
        %948 = vmatpush1.bf16.xpose.msra.mxu0 0
        %949 = vmatprep.subr.bf16.mxu0 0
        %950 = vmatpush1.bf16.xpose.msra.mxu0 0
        %951 = vmatprep.mubr.bf16.mxu0 0
        %952 = vmatmul.mubr.bf16.gmra.mrb[0].mxu0 %v914
        %v953 = vpop.f32.mrb[0].mxu0
        %v954 = vadd.f32 0.0, %v953
        %v955 = vpop.f32.mrb[0].mxu0
        %v956 = vpop.f32.mrb[0].mxu0
        %v957 = vpop.f32.mrb[0].mxu0
        %958 = vdwg.mxu0
        %v959 = vmul.f32 %v906, 0.35355338
        %v960 = vmul.f32 %v954, 0.35355338
        %v963 = vlaneseq
        %v964 = vshrl.u32 %v963, 7
        %v965 = vsub.s32 0, %v964
        %v966 = vrot.slane %v740, %v965
        %v967 = vlaneseq
        %v968 = vshrl.u32 %v967, 7
        %v969 = vsub.s32 0, %v968
        %v970 = vrot.slane %v741, %v969
        %v973 = vadd.f32 %v959, %v966
        %v974 = vadd.f32 %v960, %v970
        %v975 = vsel %vm864, %v973, -inf
        %976 = vmax.xlane.f32.xlu0 %v975
        %v977 = vpop.xlane.xlu0 %976
        %v978 = vsel %vm864, %v974, -inf
        %979 = vmax.xlane.f32.xlu0 %v978
        %v980 = vpop.xlane.xlu0 %979
        %v981 = vsub.f32 %v973, %v977
        %v982 = vsub.f32 %v974, %v980
        %v983 = vmul.f32 %v981, 1.442695
        %v984 = vpow.pop %v983
        %v985 = vmul.f32 %v982, 1.442695
        %v986 = vpow.pop %v985
        %v987 = vsel %vm864, %v984, 0.0
        %988 = vadd.xlane.f32.xlu0 %v987
        %v989 = vpop.xlane.xlu0 %988
        %v990 = vsel %vm864, %v986, 0.0
        %991 = vadd.xlane.f32.xlu0 %v990
        %v992 = vpop.xlane.xlu0 %991
        %v993 = vrcp.pop %v989
        %v994 = vrcp.pop %v992
        %v995 = vmul.f32 %v984, %v993
        %v996 = vmul.f32 %v986, %v994
        %v997 = vpack.c.bf16 %v995, %v995
        %v998 = vpack.c.bf16 %v996, %v996
        %999 = vrot.lane.b32.xlu0 %v860, 64
        %v1000 = vpop.permute.xlu0 %999
        %v1002 = vsel %vm864, %v997, 0
        %vm1004 = vcmask 1043456
        %v1006 = vsel %vm1004, %v1000, 0
        %1008 = vmatprep.subr.bf16.mxu0 0
        %1009 = vmatpush1.bf16.msra.mxu0 %v1006
        %1010 = vmatprep.subr.bf16.mxu0 0
        %1011 = vmatpush1.bf16.msra.mxu0 0
        %1012 = vmatprep.subr.bf16.mxu0 0
        %1013 = vmatpush1.bf16.msra.mxu0 0
        %1014 = vmatprep.subr.bf16.mxu0 0
        %1015 = vmatpush1.bf16.msra.mxu0 0
        %1016 = vmatprep.subr.bf16.mxu0 0
        %1017 = vmatpush1.bf16.msra.mxu0 0
        %1018 = vmatprep.subr.bf16.mxu0 0
        %1019 = vmatpush1.bf16.msra.mxu0 0
        %1020 = vmatprep.subr.bf16.mxu0 0
        %1021 = vmatpush1.bf16.msra.mxu0 0
        %1022 = vmatprep.subr.bf16.mxu0 0
        %1023 = vmatpush1.bf16.msra.mxu0 0
        %1024 = vmatprep.subr.bf16.mxu0 0
        %1025 = vmatpush1.bf16.msra.mxu0 0
        %1026 = vmatprep.subr.bf16.mxu0 0
        %1027 = vmatpush1.bf16.msra.mxu0 0
        %1028 = vmatprep.subr.bf16.mxu0 0
        %1029 = vmatpush1.bf16.msra.mxu0 0
        %1030 = vmatprep.subr.bf16.mxu0 0
        %1031 = vmatpush1.bf16.msra.mxu0 0
        %1032 = vmatprep.subr.bf16.mxu0 0
        %1033 = vmatpush1.bf16.msra.mxu0 0
        %1034 = vmatprep.subr.bf16.mxu0 0
        %1035 = vmatpush1.bf16.msra.mxu0 0
        %1036 = vmatprep.subr.bf16.mxu0 0
        %1037 = vmatpush1.bf16.msra.mxu0 0
        %1038 = vmatprep.subr.bf16.mxu0 0
        %1039 = vmatpush1.bf16.msra.mxu0 0
        %1040 = vmatprep.mubr.bf16.mxu0 0
        %1041 = vmatmul.mubr.bf16.gmra.mrb[0].mxu0 %v1002
        %v1042 = vpop.f32.mrb[0].mxu0
        %v1043 = vadd.f32 0.0, %v1042
        %v1044 = vpop.f32.mrb[0].mxu0
        %v1045 = vpop.f32.mrb[0].mxu0
        %v1046 = vpop.f32.mrb[0].mxu0
        %1047 = vdwg.mxu0
        %1048 = vrot.lane.b32.xlu0 %v861, 64
        %v1049 = vpop.permute.xlu0 %1048
        %v1051 = vsel %vm864, %v998, 0
        %v1054 = vsel %vm1004, %v1049, 0
        %1056 = vmatprep.subr.bf16.mxu0 0
        %1057 = vmatpush1.bf16.msra.mxu0 %v1054
        %1058 = vmatprep.subr.bf16.mxu0 0
        %1059 = vmatpush1.bf16.msra.mxu0 0
        %1060 = vmatprep.subr.bf16.mxu0 0
        %1061 = vmatpush1.bf16.msra.mxu0 0
        %1062 = vmatprep.subr.bf16.mxu0 0
        %1063 = vmatpush1.bf16.msra.mxu0 0
        %1064 = vmatprep.subr.bf16.mxu0 0
        %1065 = vmatpush1.bf16.msra.mxu0 0
        %1066 = vmatprep.subr.bf16.mxu0 0
        %1067 = vmatpush1.bf16.msra.mxu0 0
        %1068 = vmatprep.subr.bf16.mxu0 0
        %1069 = vmatpush1.bf16.msra.mxu0 0
        %1070 = vmatprep.subr.bf16.mxu0 0
        %1071 = vmatpush1.bf16.msra.mxu0 0
        %1072 = vmatprep.subr.bf16.mxu0 0
        %1073 = vmatpush1.bf16.msra.mxu0 0
        %1074 = vmatprep.subr.bf16.mxu0 0
        %1075 = vmatpush1.bf16.msra.mxu0 0
        %1076 = vmatprep.subr.bf16.mxu0 0
        %1077 = vmatpush1.bf16.msra.mxu0 0
        %1078 = vmatprep.subr.bf16.mxu0 0
        %1079 = vmatpush1.bf16.msra.mxu0 0
        %1080 = vmatprep.subr.bf16.mxu0 0
        %1081 = vmatpush1.bf16.msra.mxu0 0
        %1082 = vmatprep.subr.bf16.mxu0 0
        %1083 = vmatpush1.bf16.msra.mxu0 0
        %1084 = vmatprep.subr.bf16.mxu0 0
        %1085 = vmatpush1.bf16.msra.mxu0 0
        %1086 = vmatprep.subr.bf16.mxu0 0
        %1087 = vmatpush1.bf16.msra.mxu0 0
        %1088 = vmatprep.mubr.bf16.mxu0 0
        %1089 = vmatmul.mubr.bf16.gmra.mrb[0].mxu0 %v1051
        %v1090 = vpop.f32.mrb[0].mxu0
        %v1091 = vadd.f32 0.0, %v1090
        %v1092 = vpop.f32.mrb[0].mxu0
        %v1093 = vpop.f32.mrb[0].mxu0
        %v1094 = vpop.f32.mrb[0].mxu0
        %1095 = vdwg.mxu0
        %1096 = vst.msk [vmem:[#allocation2] sm:$0xff] %vm864, %v1043
        %1097 = vst.msk [vmem:[#allocation2 + $0x8] sm:$0xff] %vm864, %v1091
        %1098 = vrot.lane.b32.xlu0 %v860, 120
        %v1099 = vpop.permute.xlu0 %1098
        %1100 = vrot.lane.b32.xlu0 %v860, 88
        %v1101 = vpop.permute.xlu0 %1100
        %v1103 = vsel %vm864, %v1099, 0
        %v1106 = vsel %vm864, %v1101, 0
        %1108 = vmatprep.subr.bf16.mxu0 0
        %1109 = vmatpush1.bf16.xpose.msra.mxu0 %v1106
        %1110 = vmatprep.subr.bf16.mxu0 0
        %1111 = vmatpush1.bf16.xpose.msra.mxu0 0
        %1112 = vmatprep.subr.bf16.mxu0 0
        %1113 = vmatpush1.bf16.xpose.msra.mxu0 0
        %1114 = vmatprep.subr.bf16.mxu0 0
        %1115 = vmatpush1.bf16.xpose.msra.mxu0 0
        %1116 = vmatprep.subr.bf16.mxu0 0
        %1117 = vmatpush1.bf16.xpose.msra.mxu0 0
        %1118 = vmatprep.subr.bf16.mxu0 0
        %1119 = vmatpush1.bf16.xpose.msra.mxu0 0
        %1120 = vmatprep.subr.bf16.mxu0 0
        %1121 = vmatpush1.bf16.xpose.msra.mxu0 0
        %1122 = vmatprep.subr.bf16.mxu0 0
        %1123 = vmatpush1.bf16.xpose.msra.mxu0 0
        %1124 = vmatprep.subr.bf16.mxu0 0
        %1125 = vmatpush1.bf16.xpose.msra.mxu0 0
        %1126 = vmatprep.subr.bf16.mxu0 0
        %1127 = vmatpush1.bf16.xpose.msra.mxu0 0
        %1128 = vmatprep.subr.bf16.mxu0 0
        %1129 = vmatpush1.bf16.xpose.msra.mxu0 0
        %1130 = vmatprep.subr.bf16.mxu0 0
        %1131 = vmatpush1.bf16.xpose.msra.mxu0 0
        %1132 = vmatprep.subr.bf16.mxu0 0
        %1133 = vmatpush1.bf16.xpose.msra.mxu0 0
        %1134 = vmatprep.subr.bf16.mxu0 0
        %1135 = vmatpush1.bf16.xpose.msra.mxu0 0
        %1136 = vmatprep.subr.bf16.mxu0 0
        %1137 = vmatpush1.bf16.xpose.msra.mxu0 0
        %1138 = vmatprep.subr.bf16.mxu0 0
        %1139 = vmatpush1.bf16.xpose.msra.mxu0 0
        %1140 = vmatprep.mubr.bf16.mxu0 0
        %1141 = vmatmul.mubr.bf16.gmra.mrb[0].mxu0 %v1103
        %v1142 = vpop.f32.mrb[0].mxu0
        %v1143 = vadd.f32 0.0, %v1142
        %v1144 = vpop.f32.mrb[0].mxu0
        %v1145 = vpop.f32.mrb[0].mxu0
        %v1146 = vpop.f32.mrb[0].mxu0
        %1147 = vdwg.mxu0
        %1148 = vrot.lane.b32.xlu0 %v861, 120
        %v1149 = vpop.permute.xlu0 %1148
        %1150 = vrot.lane.b32.xlu0 %v861, 88
        %v1151 = vpop.permute.xlu0 %1150
        %v1153 = vsel %vm864, %v1149, 0
        %v1156 = vsel %vm864, %v1151, 0
        %1158 = vmatprep.subr.bf16.mxu0 0
        %1159 = vmatpush1.bf16.xpose.msra.mxu0 %v1156
        %1160 = vmatprep.subr.bf16.mxu0 0
        %1161 = vmatpush1.bf16.xpose.msra.mxu0 0
        %1162 = vmatprep.subr.bf16.mxu0 0
        %1163 = vmatpush1.bf16.xpose.msra.mxu0 0
        %1164 = vmatprep.subr.bf16.mxu0 0
        %1165 = vmatpush1.bf16.xpose.msra.mxu0 0
        %1166 = vmatprep.subr.bf16.mxu0 0
        %1167 = vmatpush1.bf16.xpose.msra.mxu0 0
        %1168 = vmatprep.subr.bf16.mxu0 0
        %1169 = vmatpush1.bf16.xpose.msra.mxu0 0
        %1170 = vmatprep.subr.bf16.mxu0 0
        %1171 = vmatpush1.bf16.xpose.msra.mxu0 0
        %1172 = vmatprep.subr.bf16.mxu0 0
        %1173 = vmatpush1.bf16.xpose.msra.mxu0 0
        %1174 = vmatprep.subr.bf16.mxu0 0
        %1175 = vmatpush1.bf16.xpose.msra.mxu0 0
        %1176 = vmatprep.subr.bf16.mxu0 0
        %1177 = vmatpush1.bf16.xpose.msra.mxu0 0
        %1178 = vmatprep.subr.bf16.mxu0 0
        %1179 = vmatpush1.bf16.xpose.msra.mxu0 0
        %1180 = vmatprep.subr.bf16.mxu0 0
        %1181 = vmatpush1.bf16.xpose.msra.mxu0 0
        %1182 = vmatprep.subr.bf16.mxu0 0
        %1183 = vmatpush1.bf16.xpose.msra.mxu0 0
        %1184 = vmatprep.subr.bf16.mxu0 0
        %1185 = vmatpush1.bf16.xpose.msra.mxu0 0
        %1186 = vmatprep.subr.bf16.mxu0 0
        %1187 = vmatpush1.bf16.xpose.msra.mxu0 0
        %1188 = vmatprep.subr.bf16.mxu0 0
        %1189 = vmatpush1.bf16.xpose.msra.mxu0 0
        %1190 = vmatprep.mubr.bf16.mxu0 0
        %1191 = vmatmul.mubr.bf16.gmra.mrb[0].mxu0 %v1153
        %v1192 = vpop.f32.mrb[0].mxu0
        %v1193 = vadd.f32 0.0, %v1192
        %v1194 = vpop.f32.mrb[0].mxu0
        %v1195 = vpop.f32.mrb[0].mxu0
        %v1196 = vpop.f32.mrb[0].mxu0
        %1197 = vdwg.mxu0
        %v1198 = vmul.f32 %v1143, 0.35355338
        %v1199 = vmul.f32 %v1193, 0.35355338
        %v1200 = vadd.f32 %v1198, %v966
        %v1201 = vadd.f32 %v1199, %v970
        %v1202 = vsel %vm864, %v1200, -inf
        %1203 = vmax.xlane.f32.xlu0 %v1202
        %v1204 = vpop.xlane.xlu0 %1203
        %v1205 = vsel %vm864, %v1201, -inf
        %1206 = vmax.xlane.f32.xlu0 %v1205
        %v1207 = vpop.xlane.xlu0 %1206
        %v1208 = vsub.f32 %v1200, %v1204
        %v1209 = vsub.f32 %v1201, %v1207
        %v1210 = vmul.f32 %v1208, 1.442695
        %v1211 = vpow.pop %v1210
        %v1212 = vmul.f32 %v1209, 1.442695
        %v1213 = vpow.pop %v1212
        %v1214 = vsel %vm864, %v1211, 0.0
        %1215 = vadd.xlane.f32.xlu0 %v1214
        %v1216 = vpop.xlane.xlu0 %1215
        %v1217 = vsel %vm864, %v1213, 0.0
        %1218 = vadd.xlane.f32.xlu0 %v1217
        %v1219 = vpop.xlane.xlu0 %1218
        %v1220 = vrcp.pop %v1216
        %v1221 = vrcp.pop %v1219
        %v1222 = vmul.f32 %v1211, %v1220
        %v1223 = vmul.f32 %v1213, %v1221
        %v1224 = vpack.c.bf16 %v1222, %v1222
        %v1225 = vpack.c.bf16 %v1223, %v1223
        %1226 = vrot.lane.b32.xlu0 %v860, 56
        %v1227 = vpop.permute.xlu0 %1226
        %v1229 = vsel %vm864, %v1224, 0
        %v1232 = vsel %vm1004, %v1227, 0
        %1234 = vmatprep.subr.bf16.mxu0 0
        %1235 = vmatpush1.bf16.msra.mxu0 %v1232
        %1236 = vmatprep.subr.bf16.mxu0 0
        %1237 = vmatpush1.bf16.msra.mxu0 0
        %1238 = vmatprep.subr.bf16.mxu0 0
        %1239 = vmatpush1.bf16.msra.mxu0 0
        %1240 = vmatprep.subr.bf16.mxu0 0
        %1241 = vmatpush1.bf16.msra.mxu0 0
        %1242 = vmatprep.subr.bf16.mxu0 0
        %1243 = vmatpush1.bf16.msra.mxu0 0
        %1244 = vmatprep.subr.bf16.mxu0 0
        %1245 = vmatpush1.bf16.msra.mxu0 0
        %1246 = vmatprep.subr.bf16.mxu0 0
        %1247 = vmatpush1.bf16.msra.mxu0 0
        %1248 = vmatprep.subr.bf16.mxu0 0
        %1249 = vmatpush1.bf16.msra.mxu0 0
        %1250 = vmatprep.subr.bf16.mxu0 0
        %1251 = vmatpush1.bf16.msra.mxu0 0
        %1252 = vmatprep.subr.bf16.mxu0 0
        %1253 = vmatpush1.bf16.msra.mxu0 0
        %1254 = vmatprep.subr.bf16.mxu0 0
        %1255 = vmatpush1.bf16.msra.mxu0 0
        %1256 = vmatprep.subr.bf16.mxu0 0
        %1257 = vmatpush1.bf16.msra.mxu0 0
        %1258 = vmatprep.subr.bf16.mxu0 0
        %1259 = vmatpush1.bf16.msra.mxu0 0
        %1260 = vmatprep.subr.bf16.mxu0 0
        %1261 = vmatpush1.bf16.msra.mxu0 0
        %1262 = vmatprep.subr.bf16.mxu0 0
        %1263 = vmatpush1.bf16.msra.mxu0 0
        %1264 = vmatprep.subr.bf16.mxu0 0
        %1265 = vmatpush1.bf16.msra.mxu0 0
        %1266 = vmatprep.mubr.bf16.mxu0 0
        %1267 = vmatmul.mubr.bf16.gmra.mrb[0].mxu0 %v1229
        %v1268 = vpop.f32.mrb[0].mxu0
        %v1269 = vadd.f32 0.0, %v1268
        %v1270 = vpop.f32.mrb[0].mxu0
        %v1271 = vpop.f32.mrb[0].mxu0
        %v1272 = vpop.f32.mrb[0].mxu0
        %1273 = vdwg.mxu0
        %1274 = vrot.lane.b32.xlu0 %v861, 56
        %v1275 = vpop.permute.xlu0 %1274
        %v1277 = vsel %vm864, %v1225, 0
        %v1280 = vsel %vm1004, %v1275, 0
        %1282 = vmatprep.subr.bf16.mxu0 0
        %1283 = vmatpush1.bf16.msra.mxu0 %v1280
        %1284 = vmatprep.subr.bf16.mxu0 0
        %1285 = vmatpush1.bf16.msra.mxu0 0
        %1286 = vmatprep.subr.bf16.mxu0 0
        %1287 = vmatpush1.bf16.msra.mxu0 0
        %1288 = vmatprep.subr.bf16.mxu0 0
        %1289 = vmatpush1.bf16.msra.mxu0 0
        %1290 = vmatprep.subr.bf16.mxu0 0
        %1291 = vmatpush1.bf16.msra.mxu0 0
        %1292 = vmatprep.subr.bf16.mxu0 0
        %1293 = vmatpush1.bf16.msra.mxu0 0
        %1294 = vmatprep.subr.bf16.mxu0 0
        %1295 = vmatpush1.bf16.msra.mxu0 0
        %1296 = vmatprep.subr.bf16.mxu0 0
        %1297 = vmatpush1.bf16.msra.mxu0 0
        %1298 = vmatprep.subr.bf16.mxu0 0
        %1299 = vmatpush1.bf16.msra.mxu0 0
        %1300 = vmatprep.subr.bf16.mxu0 0
        %1301 = vmatpush1.bf16.msra.mxu0 0
        %1302 = vmatprep.subr.bf16.mxu0 0
        %1303 = vmatpush1.bf16.msra.mxu0 0
        %1304 = vmatprep.subr.bf16.mxu0 0
        %1305 = vmatpush1.bf16.msra.mxu0 0
        %1306 = vmatprep.subr.bf16.mxu0 0
        %1307 = vmatpush1.bf16.msra.mxu0 0
        %1308 = vmatprep.subr.bf16.mxu0 0
        %1309 = vmatpush1.bf16.msra.mxu0 0
        %1310 = vmatprep.subr.bf16.mxu0 0
        %1311 = vmatpush1.bf16.msra.mxu0 0
        %1312 = vmatprep.subr.bf16.mxu0 0
        %1313 = vmatpush1.bf16.msra.mxu0 0
        %1314 = vmatprep.mubr.bf16.mxu0 0
        %1315 = vmatmul.mubr.bf16.gmra.mrb[0].mxu0 %v1277
        %v1316 = vpop.f32.mrb[0].mxu0
        %v1317 = vadd.f32 0.0, %v1316
        %v1318 = vpop.f32.mrb[0].mxu0
        %v1319 = vpop.f32.mrb[0].mxu0
        %v1320 = vpop.f32.mrb[0].mxu0
        %1321 = vdwg.mxu0
        %1324 = vrot.lane.b32.xlu0 %v1269, 8
        %v1325 = vpop.permute.xlu0 %1324
        %1326 = vrot.lane.b32.xlu0 %v1317, 8
        %v1327 = vpop.permute.xlu0 %1326
        %vm1330 = vcmask 130112
        %1331 = vst.msk [vmem:[#allocation2] sm:$0xff] %vm1330, %v1325
        %1332 = vst.msk [vmem:[#allocation2 + $0x8] sm:$0xff] %vm1330, %v1327
        %1333 = vrot.lane.b32.xlu0 %v860, 112
        %v1334 = vpop.permute.xlu0 %1333
        %1335 = vrot.lane.b32.xlu0 %v860, 80
        %v1336 = vpop.permute.xlu0 %1335
        %v1338 = vsel %vm864, %v1334, 0
        %v1341 = vsel %vm864, %v1336, 0
        %1343 = vmatprep.subr.bf16.mxu0 0
        %1344 = vmatpush1.bf16.xpose.msra.mxu0 %v1341
        %1345 = vmatprep.subr.bf16.mxu0 0
        %1346 = vmatpush1.bf16.xpose.msra.mxu0 0
        %1347 = vmatprep.subr.bf16.mxu0 0
        %1348 = vmatpush1.bf16.xpose.msra.mxu0 0
        %1349 = vmatprep.subr.bf16.mxu0 0
        %1350 = vmatpush1.bf16.xpose.msra.mxu0 0
        %1351 = vmatprep.subr.bf16.mxu0 0
        %1352 = vmatpush1.bf16.xpose.msra.mxu0 0
        %1353 = vmatprep.subr.bf16.mxu0 0
        %1354 = vmatpush1.bf16.xpose.msra.mxu0 0
        %1355 = vmatprep.subr.bf16.mxu0 0
        %1356 = vmatpush1.bf16.xpose.msra.mxu0 0
        %1357 = vmatprep.subr.bf16.mxu0 0
        %1358 = vmatpush1.bf16.xpose.msra.mxu0 0
        %1359 = vmatprep.subr.bf16.mxu0 0
        %1360 = vmatpush1.bf16.xpose.msra.mxu0 0
        %1361 = vmatprep.subr.bf16.mxu0 0
        %1362 = vmatpush1.bf16.xpose.msra.mxu0 0
        %1363 = vmatprep.subr.bf16.mxu0 0
        %1364 = vmatpush1.bf16.xpose.msra.mxu0 0
        %1365 = vmatprep.subr.bf16.mxu0 0
        %1366 = vmatpush1.bf16.xpose.msra.mxu0 0
        %1367 = vmatprep.subr.bf16.mxu0 0
        %1368 = vmatpush1.bf16.xpose.msra.mxu0 0
        %1369 = vmatprep.subr.bf16.mxu0 0
        %1370 = vmatpush1.bf16.xpose.msra.mxu0 0
        %1371 = vmatprep.subr.bf16.mxu0 0
        %1372 = vmatpush1.bf16.xpose.msra.mxu0 0
        %1373 = vmatprep.subr.bf16.mxu0 0
        %1374 = vmatpush1.bf16.xpose.msra.mxu0 0
        %1375 = vmatprep.mubr.bf16.mxu0 0
        %1376 = vmatmul.mubr.bf16.gmra.mrb[0].mxu0 %v1338
        %v1377 = vpop.f32.mrb[0].mxu0
        %v1378 = vadd.f32 0.0, %v1377
        %v1379 = vpop.f32.mrb[0].mxu0
        %v1380 = vpop.f32.mrb[0].mxu0
        %v1381 = vpop.f32.mrb[0].mxu0
        %1382 = vdwg.mxu0
        %1383 = vrot.lane.b32.xlu0 %v861, 112
        %v1384 = vpop.permute.xlu0 %1383
        %1385 = vrot.lane.b32.xlu0 %v861, 80
        %v1386 = vpop.permute.xlu0 %1385
        %v1388 = vsel %vm864, %v1384, 0
        %v1391 = vsel %vm864, %v1386, 0
        %1393 = vmatprep.subr.bf16.mxu0 0
        %1394 = vmatpush1.bf16.xpose.msra.mxu0 %v1391
        %1395 = vmatprep.subr.bf16.mxu0 0
        %1396 = vmatpush1.bf16.xpose.msra.mxu0 0
        %1397 = vmatprep.subr.bf16.mxu0 0
        %1398 = vmatpush1.bf16.xpose.msra.mxu0 0
        %1399 = vmatprep.subr.bf16.mxu0 0
        %1400 = vmatpush1.bf16.xpose.msra.mxu0 0
        %1401 = vmatprep.subr.bf16.mxu0 0
        %1402 = vmatpush1.bf16.xpose.msra.mxu0 0
        %1403 = vmatprep.subr.bf16.mxu0 0
        %1404 = vmatpush1.bf16.xpose.msra.mxu0 0
        %1405 = vmatprep.subr.bf16.mxu0 0
        %1406 = vmatpush1.bf16.xpose.msra.mxu0 0
        %1407 = vmatprep.subr.bf16.mxu0 0
        %1408 = vmatpush1.bf16.xpose.msra.mxu0 0
        %1409 = vmatprep.subr.bf16.mxu0 0
        %1410 = vmatpush1.bf16.xpose.msra.mxu0 0
        %1411 = vmatprep.subr.bf16.mxu0 0
        %1412 = vmatpush1.bf16.xpose.msra.mxu0 0
        %1413 = vmatprep.subr.bf16.mxu0 0
        %1414 = vmatpush1.bf16.xpose.msra.mxu0 0
        %1415 = vmatprep.subr.bf16.mxu0 0
        %1416 = vmatpush1.bf16.xpose.msra.mxu0 0
        %1417 = vmatprep.subr.bf16.mxu0 0
        %1418 = vmatpush1.bf16.xpose.msra.mxu0 0
        %1419 = vmatprep.subr.bf16.mxu0 0
        %1420 = vmatpush1.bf16.xpose.msra.mxu0 0
        %1421 = vmatprep.subr.bf16.mxu0 0
        %1422 = vmatpush1.bf16.xpose.msra.mxu0 0
        %1423 = vmatprep.subr.bf16.mxu0 0
        %1424 = vmatpush1.bf16.xpose.msra.mxu0 0
        %1425 = vmatprep.mubr.bf16.mxu0 0
        %1426 = vmatmul.mubr.bf16.gmra.mrb[0].mxu0 %v1388
        %v1427 = vpop.f32.mrb[0].mxu0
        %v1428 = vadd.f32 0.0, %v1427
        %v1429 = vpop.f32.mrb[0].mxu0
        %v1430 = vpop.f32.mrb[0].mxu0
        %v1431 = vpop.f32.mrb[0].mxu0
        %1432 = vdwg.mxu0
        %v1433 = vmul.f32 %v1378, 0.35355338
        %v1434 = vmul.f32 %v1428, 0.35355338
        %v1435 = vadd.f32 %v1433, %v966
        %v1436 = vadd.f32 %v1434, %v970
        %v1437 = vsel %vm864, %v1435, -inf
        %1438 = vmax.xlane.f32.xlu0 %v1437
        %v1439 = vpop.xlane.xlu0 %1438
        %v1440 = vsel %vm864, %v1436, -inf
        %1441 = vmax.xlane.f32.xlu0 %v1440
        %v1442 = vpop.xlane.xlu0 %1441
        %v1443 = vsub.f32 %v1435, %v1439
        %v1444 = vsub.f32 %v1436, %v1442
        %v1445 = vmul.f32 %v1443, 1.442695
        %v1446 = vpow.pop %v1445
        %v1447 = vmul.f32 %v1444, 1.442695
        %v1448 = vpow.pop %v1447
        %v1449 = vsel %vm864, %v1446, 0.0
        %1450 = vadd.xlane.f32.xlu0 %v1449
        %v1451 = vpop.xlane.xlu0 %1450
        %v1452 = vsel %vm864, %v1448, 0.0
        %1453 = vadd.xlane.f32.xlu0 %v1452
        %v1454 = vpop.xlane.xlu0 %1453
        %v1455 = vrcp.pop %v1451
        %v1456 = vrcp.pop %v1454
        %v1457 = vmul.f32 %v1446, %v1455
        %v1458 = vmul.f32 %v1448, %v1456
        %v1459 = vpack.c.bf16 %v1457, %v1457
        %v1460 = vpack.c.bf16 %v1458, %v1458
        %1461 = vrot.lane.b32.xlu0 %v860, 48
        %v1462 = vpop.permute.xlu0 %1461
        %v1464 = vsel %vm864, %v1459, 0
        %v1467 = vsel %vm1004, %v1462, 0
        %1469 = vmatprep.subr.bf16.mxu0 0
        %1470 = vmatpush1.bf16.msra.mxu0 %v1467
        %1471 = vmatprep.subr.bf16.mxu0 0
        %1472 = vmatpush1.bf16.msra.mxu0 0
        %1473 = vmatprep.subr.bf16.mxu0 0
        %1474 = vmatpush1.bf16.msra.mxu0 0
        %1475 = vmatprep.subr.bf16.mxu0 0
        %1476 = vmatpush1.bf16.msra.mxu0 0
        %1477 = vmatprep.subr.bf16.mxu0 0
        %1478 = vmatpush1.bf16.msra.mxu0 0
        %1479 = vmatprep.subr.bf16.mxu0 0
        %1480 = vmatpush1.bf16.msra.mxu0 0
        %1481 = vmatprep.subr.bf16.mxu0 0
        %1482 = vmatpush1.bf16.msra.mxu0 0
        %1483 = vmatprep.subr.bf16.mxu0 0
        %1484 = vmatpush1.bf16.msra.mxu0 0
        %1485 = vmatprep.subr.bf16.mxu0 0
        %1486 = vmatpush1.bf16.msra.mxu0 0
        %1487 = vmatprep.subr.bf16.mxu0 0
        %1488 = vmatpush1.bf16.msra.mxu0 0
        %1489 = vmatprep.subr.bf16.mxu0 0
        %1490 = vmatpush1.bf16.msra.mxu0 0
        %1491 = vmatprep.subr.bf16.mxu0 0
        %1492 = vmatpush1.bf16.msra.mxu0 0
        %1493 = vmatprep.subr.bf16.mxu0 0
        %1494 = vmatpush1.bf16.msra.mxu0 0
        %1495 = vmatprep.subr.bf16.mxu0 0
        %1496 = vmatpush1.bf16.msra.mxu0 0
        %1497 = vmatprep.subr.bf16.mxu0 0
        %1498 = vmatpush1.bf16.msra.mxu0 0
        %1499 = vmatprep.subr.bf16.mxu0 0
        %1500 = vmatpush1.bf16.msra.mxu0 0
        %1501 = vmatprep.mubr.bf16.mxu0 0
        %1502 = vmatmul.mubr.bf16.gmra.mrb[0].mxu0 %v1464
        %v1503 = vpop.f32.mrb[0].mxu0
        %v1504 = vadd.f32 0.0, %v1503
        %v1505 = vpop.f32.mrb[0].mxu0
        %v1506 = vpop.f32.mrb[0].mxu0
        %v1507 = vpop.f32.mrb[0].mxu0
        %1508 = vdwg.mxu0
        %1509 = vrot.lane.b32.xlu0 %v861, 48
        %v1510 = vpop.permute.xlu0 %1509
        %v1512 = vsel %vm864, %v1460, 0
        %v1515 = vsel %vm1004, %v1510, 0
        %1517 = vmatprep.subr.bf16.mxu0 0
        %1518 = vmatpush1.bf16.msra.mxu0 %v1515
        %1519 = vmatprep.subr.bf16.mxu0 0
        %1520 = vmatpush1.bf16.msra.mxu0 0
        %1521 = vmatprep.subr.bf16.mxu0 0
        %1522 = vmatpush1.bf16.msra.mxu0 0
        %1523 = vmatprep.subr.bf16.mxu0 0
        %1524 = vmatpush1.bf16.msra.mxu0 0
        %1525 = vmatprep.subr.bf16.mxu0 0
        %1526 = vmatpush1.bf16.msra.mxu0 0
        %1527 = vmatprep.subr.bf16.mxu0 0
        %1528 = vmatpush1.bf16.msra.mxu0 0
        %1529 = vmatprep.subr.bf16.mxu0 0
        %1530 = vmatpush1.bf16.msra.mxu0 0
        %1531 = vmatprep.subr.bf16.mxu0 0
        %1532 = vmatpush1.bf16.msra.mxu0 0
        %1533 = vmatprep.subr.bf16.mxu0 0
        %1534 = vmatpush1.bf16.msra.mxu0 0
        %1535 = vmatprep.subr.bf16.mxu0 0
        %1536 = vmatpush1.bf16.msra.mxu0 0
        %1537 = vmatprep.subr.bf16.mxu0 0
        %1538 = vmatpush1.bf16.msra.mxu0 0
        %1539 = vmatprep.subr.bf16.mxu0 0
        %1540 = vmatpush1.bf16.msra.mxu0 0
        %1541 = vmatprep.subr.bf16.mxu0 0
        %1542 = vmatpush1.bf16.msra.mxu0 0
        %1543 = vmatprep.subr.bf16.mxu0 0
        %1544 = vmatpush1.bf16.msra.mxu0 0
        %1545 = vmatprep.subr.bf16.mxu0 0
        %1546 = vmatpush1.bf16.msra.mxu0 0
        %1547 = vmatprep.subr.bf16.mxu0 0
        %1548 = vmatpush1.bf16.msra.mxu0 0
        %1549 = vmatprep.mubr.bf16.mxu0 0
        %1550 = vmatmul.mubr.bf16.gmra.mrb[0].mxu0 %v1512
        %v1551 = vpop.f32.mrb[0].mxu0
        %v1552 = vadd.f32 0.0, %v1551
        %v1553 = vpop.f32.mrb[0].mxu0
        %v1554 = vpop.f32.mrb[0].mxu0
        %v1555 = vpop.f32.mrb[0].mxu0
        %1556 = vdwg.mxu0
        %1559 = vrot.lane.b32.xlu0 %v1504, 16
        %v1560 = vpop.permute.xlu0 %1559
        %1561 = vrot.lane.b32.xlu0 %v1552, 16
        %v1562 = vpop.permute.xlu0 %1561
        %vm1565 = vcmask 195712
        %1566 = vst.msk [vmem:[#allocation2] sm:$0xff] %vm1565, %v1560
        %1567 = vst.msk [vmem:[#allocation2 + $0x8] sm:$0xff] %vm1565, %v1562
        %1568 = vrot.lane.b32.xlu0 %v860, 104
        %v1569 = vpop.permute.xlu0 %1568
        %1570 = vrot.lane.b32.xlu0 %v860, 72
        %v1571 = vpop.permute.xlu0 %1570
        %v1573 = vsel %vm864, %v1569, 0
        %v1576 = vsel %vm864, %v1571, 0
        %1578 = vmatprep.subr.bf16.mxu0 0
        %1579 = vmatpush1.bf16.xpose.msra.mxu0 %v1576
        %1580 = vmatprep.subr.bf16.mxu0 0
        %1581 = vmatpush1.bf16.xpose.msra.mxu0 0
        %1582 = vmatprep.subr.bf16.mxu0 0
        %1583 = vmatpush1.bf16.xpose.msra.mxu0 0
        %1584 = vmatprep.subr.bf16.mxu0 0
        %1585 = vmatpush1.bf16.xpose.msra.mxu0 0
        %1586 = vmatprep.subr.bf16.mxu0 0
        %1587 = vmatpush1.bf16.xpose.msra.mxu0 0
        %1588 = vmatprep.subr.bf16.mxu0 0
        %1589 = vmatpush1.bf16.xpose.msra.mxu0 0
        %1590 = vmatprep.subr.bf16.mxu0 0
        %1591 = vmatpush1.bf16.xpose.msra.mxu0 0
        %1592 = vmatprep.subr.bf16.mxu0 0
        %1593 = vmatpush1.bf16.xpose.msra.mxu0 0
        %1594 = vmatprep.subr.bf16.mxu0 0
        %1595 = vmatpush1.bf16.xpose.msra.mxu0 0
        %1596 = vmatprep.subr.bf16.mxu0 0
        %1597 = vmatpush1.bf16.xpose.msra.mxu0 0
        %1598 = vmatprep.subr.bf16.mxu0 0
        %1599 = vmatpush1.bf16.xpose.msra.mxu0 0
        %1600 = vmatprep.subr.bf16.mxu0 0
        %1601 = vmatpush1.bf16.xpose.msra.mxu0 0
        %1602 = vmatprep.subr.bf16.mxu0 0
        %1603 = vmatpush1.bf16.xpose.msra.mxu0 0
        %1604 = vmatprep.subr.bf16.mxu0 0
        %1605 = vmatpush1.bf16.xpose.msra.mxu0 0
        %1606 = vmatprep.subr.bf16.mxu0 0
        %1607 = vmatpush1.bf16.xpose.msra.mxu0 0
        %1608 = vmatprep.subr.bf16.mxu0 0
        %1609 = vmatpush1.bf16.xpose.msra.mxu0 0
        %1610 = vmatprep.mubr.bf16.mxu0 0
        %1611 = vmatmul.mubr.bf16.gmra.mrb[0].mxu0 %v1573
        %v1612 = vpop.f32.mrb[0].mxu0
        %v1613 = vadd.f32 0.0, %v1612
        %v1614 = vpop.f32.mrb[0].mxu0
        %v1615 = vpop.f32.mrb[0].mxu0
        %v1616 = vpop.f32.mrb[0].mxu0
        %1617 = vdwg.mxu0
        %1618 = vrot.lane.b32.xlu0 %v861, 104
        %v1619 = vpop.permute.xlu0 %1618
        %1620 = vrot.lane.b32.xlu0 %v861, 72
        %v1621 = vpop.permute.xlu0 %1620
        %v1623 = vsel %vm864, %v1619, 0
        %v1626 = vsel %vm864, %v1621, 0
        %1628 = vmatprep.subr.bf16.mxu0 0
        %1629 = vmatpush1.bf16.xpose.msra.mxu0 %v1626
        %1630 = vmatprep.subr.bf16.mxu0 0
        %1631 = vmatpush1.bf16.xpose.msra.mxu0 0
        %1632 = vmatprep.subr.bf16.mxu0 0
        %1633 = vmatpush1.bf16.xpose.msra.mxu0 0
        %1634 = vmatprep.subr.bf16.mxu0 0
        %1635 = vmatpush1.bf16.xpose.msra.mxu0 0
        %1636 = vmatprep.subr.bf16.mxu0 0
        %1637 = vmatpush1.bf16.xpose.msra.mxu0 0
        %1638 = vmatprep.subr.bf16.mxu0 0
        %1639 = vmatpush1.bf16.xpose.msra.mxu0 0
        %1640 = vmatprep.subr.bf16.mxu0 0
        %1641 = vmatpush1.bf16.xpose.msra.mxu0 0
        %1642 = vmatprep.subr.bf16.mxu0 0
        %1643 = vmatpush1.bf16.xpose.msra.mxu0 0
        %1644 = vmatprep.subr.bf16.mxu0 0
        %1645 = vmatpush1.bf16.xpose.msra.mxu0 0
        %1646 = vmatprep.subr.bf16.mxu0 0
        %1647 = vmatpush1.bf16.xpose.msra.mxu0 0
        %1648 = vmatprep.subr.bf16.mxu0 0
        %1649 = vmatpush1.bf16.xpose.msra.mxu0 0
        %1650 = vmatprep.subr.bf16.mxu0 0
        %1651 = vmatpush1.bf16.xpose.msra.mxu0 0
        %1652 = vmatprep.subr.bf16.mxu0 0
        %1653 = vmatpush1.bf16.xpose.msra.mxu0 0
        %1654 = vmatprep.subr.bf16.mxu0 0
        %1655 = vmatpush1.bf16.xpose.msra.mxu0 0
        %1656 = vmatprep.subr.bf16.mxu0 0
        %1657 = vmatpush1.bf16.xpose.msra.mxu0 0
        %1658 = vmatprep.subr.bf16.mxu0 0
        %1659 = vmatpush1.bf16.xpose.msra.mxu0 0
        %1660 = vmatprep.mubr.bf16.mxu0 0
        %1661 = vmatmul.mubr.bf16.gmra.mrb[0].mxu0 %v1623
        %v1662 = vpop.f32.mrb[0].mxu0
        %v1663 = vadd.f32 0.0, %v1662
        %v1664 = vpop.f32.mrb[0].mxu0
        %v1665 = vpop.f32.mrb[0].mxu0
        %v1666 = vpop.f32.mrb[0].mxu0
        %1667 = vdwg.mxu0
        %v1668 = vmul.f32 %v1613, 0.35355338
        %v1669 = vmul.f32 %v1663, 0.35355338
        %v1670 = vadd.f32 %v1668, %v966
        %v1671 = vadd.f32 %v1669, %v970
        %v1672 = vsel %vm864, %v1670, -inf
        %1673 = vmax.xlane.f32.xlu0 %v1672
        %v1674 = vpop.xlane.xlu0 %1673
        %v1675 = vsel %vm864, %v1671, -inf
        %1676 = vmax.xlane.f32.xlu0 %v1675
        %v1677 = vpop.xlane.xlu0 %1676
        %v1678 = vsub.f32 %v1670, %v1674
        %v1679 = vsub.f32 %v1671, %v1677
        %v1680 = vmul.f32 %v1678, 1.442695
        %v1681 = vpow.pop %v1680
        %v1682 = vmul.f32 %v1679, 1.442695
        %v1683 = vpow.pop %v1682
        %v1684 = vsel %vm864, %v1681, 0.0
        %1685 = vadd.xlane.f32.xlu0 %v1684
        %v1686 = vpop.xlane.xlu0 %1685
        %v1687 = vsel %vm864, %v1683, 0.0
        %1688 = vadd.xlane.f32.xlu0 %v1687
        %v1689 = vpop.xlane.xlu0 %1688
        %v1690 = vrcp.pop %v1686
        %v1691 = vrcp.pop %v1689
        %v1692 = vmul.f32 %v1681, %v1690
        %v1693 = vmul.f32 %v1683, %v1691
        %v1694 = vpack.c.bf16 %v1692, %v1692
        %v1695 = vpack.c.bf16 %v1693, %v1693
        %1696 = vrot.lane.b32.xlu0 %v860, 40
        %v1697 = vpop.permute.xlu0 %1696
        %v1699 = vsel %vm864, %v1694, 0
        %v1702 = vsel %vm1004, %v1697, 0
        %1704 = vmatprep.subr.bf16.mxu0 0
        %1705 = vmatpush1.bf16.msra.mxu0 %v1702
        %1706 = vmatprep.subr.bf16.mxu0 0
        %1707 = vmatpush1.bf16.msra.mxu0 0
        %1708 = vmatprep.subr.bf16.mxu0 0
        %1709 = vmatpush1.bf16.msra.mxu0 0
        %1710 = vmatprep.subr.bf16.mxu0 0
        %1711 = vmatpush1.bf16.msra.mxu0 0
        %1712 = vmatprep.subr.bf16.mxu0 0
        %1713 = vmatpush1.bf16.msra.mxu0 0
        %1714 = vmatprep.subr.bf16.mxu0 0
        %1715 = vmatpush1.bf16.msra.mxu0 0
        %1716 = vmatprep.subr.bf16.mxu0 0
        %1717 = vmatpush1.bf16.msra.mxu0 0
        %1718 = vmatprep.subr.bf16.mxu0 0
        %1719 = vmatpush1.bf16.msra.mxu0 0
        %1720 = vmatprep.subr.bf16.mxu0 0
        %1721 = vmatpush1.bf16.msra.mxu0 0
        %1722 = vmatprep.subr.bf16.mxu0 0
        %1723 = vmatpush1.bf16.msra.mxu0 0
        %1724 = vmatprep.subr.bf16.mxu0 0
        %1725 = vmatpush1.bf16.msra.mxu0 0
        %1726 = vmatprep.subr.bf16.mxu0 0
        %1727 = vmatpush1.bf16.msra.mxu0 0
        %1728 = vmatprep.subr.bf16.mxu0 0
        %1729 = vmatpush1.bf16.msra.mxu0 0
        %1730 = vmatprep.subr.bf16.mxu0 0
        %1731 = vmatpush1.bf16.msra.mxu0 0
        %1732 = vmatprep.subr.bf16.mxu0 0
        %1733 = vmatpush1.bf16.msra.mxu0 0
        %1734 = vmatprep.subr.bf16.mxu0 0
        %1735 = vmatpush1.bf16.msra.mxu0 0
        %1736 = vmatprep.mubr.bf16.mxu0 0
        %1737 = vmatmul.mubr.bf16.gmra.mrb[0].mxu0 %v1699
        %v1738 = vpop.f32.mrb[0].mxu0
        %v1739 = vadd.f32 0.0, %v1738
        %v1740 = vpop.f32.mrb[0].mxu0
        %v1741 = vpop.f32.mrb[0].mxu0
        %v1742 = vpop.f32.mrb[0].mxu0
        %1743 = vdwg.mxu0
        %1744 = vrot.lane.b32.xlu0 %v861, 40
        %v1745 = vpop.permute.xlu0 %1744
        %v1747 = vsel %vm864, %v1695, 0
        %v1750 = vsel %vm1004, %v1745, 0
        %1752 = vmatprep.subr.bf16.mxu0 0
        %1753 = vmatpush1.bf16.msra.mxu0 %v1750
        %1754 = vmatprep.subr.bf16.mxu0 0
        %1755 = vmatpush1.bf16.msra.mxu0 0
        %1756 = vmatprep.subr.bf16.mxu0 0
        %1757 = vmatpush1.bf16.msra.mxu0 0
        %1758 = vmatprep.subr.bf16.mxu0 0
        %1759 = vmatpush1.bf16.msra.mxu0 0
        %1760 = vmatprep.subr.bf16.mxu0 0
        %1761 = vmatpush1.bf16.msra.mxu0 0
        %1762 = vmatprep.subr.bf16.mxu0 0
        %1763 = vmatpush1.bf16.msra.mxu0 0
        %1764 = vmatprep.subr.bf16.mxu0 0
        %1765 = vmatpush1.bf16.msra.mxu0 0
        %1766 = vmatprep.subr.bf16.mxu0 0
        %1767 = vmatpush1.bf16.msra.mxu0 0
        %1768 = vmatprep.subr.bf16.mxu0 0
        %1769 = vmatpush1.bf16.msra.mxu0 0
        %1770 = vmatprep.subr.bf16.mxu0 0
        %1771 = vmatpush1.bf16.msra.mxu0 0
        %1772 = vmatprep.subr.bf16.mxu0 0
        %1773 = vmatpush1.bf16.msra.mxu0 0
        %1774 = vmatprep.subr.bf16.mxu0 0
        %1775 = vmatpush1.bf16.msra.mxu0 0
        %1776 = vmatprep.subr.bf16.mxu0 0
        %1777 = vmatpush1.bf16.msra.mxu0 0
        %1778 = vmatprep.subr.bf16.mxu0 0
        %1779 = vmatpush1.bf16.msra.mxu0 0
        %1780 = vmatprep.subr.bf16.mxu0 0
        %1781 = vmatpush1.bf16.msra.mxu0 0
        %1782 = vmatprep.subr.bf16.mxu0 0
        %1783 = vmatpush1.bf16.msra.mxu0 0
        %1784 = vmatprep.mubr.bf16.mxu0 0
        %1785 = vmatmul.mubr.bf16.gmra.mrb[0].mxu0 %v1747
        %v1786 = vpop.f32.mrb[0].mxu0
        %v1787 = vadd.f32 0.0, %v1786
        %v1788 = vpop.f32.mrb[0].mxu0
        %v1789 = vpop.f32.mrb[0].mxu0
        %v1790 = vpop.f32.mrb[0].mxu0
        %1791 = vdwg.mxu0
        %1794 = vrot.lane.b32.xlu0 %v1739, 24
        %v1795 = vpop.permute.xlu0 %1794
        %1796 = vrot.lane.b32.xlu0 %v1787, 24
        %v1797 = vpop.permute.xlu0 %1796
        %vm1800 = vcmask 261312
        %1801 = vst.msk [vmem:[#allocation2] sm:$0xff] %vm1800, %v1795
        %1802 = vst.msk [vmem:[#allocation2 + $0x8] sm:$0xff] %vm1800, %v1797
        %v1803 = vld [vmem:[#allocation2] sm:$0xff]
        %v1804 = vld [vmem:[#allocation2 + $0x8] sm:$0xff]
        %v1805 = vpack.c.bf16 %v1804, %v1803
        %v1806 = vld [vmem:[%s703] sm:$0xf]
        %v1807 = vld [vmem:[%s703 + $0x4] sm:$0xf]
        %v1808 = vld [vmem:[%s703 + $0x8] sm:$0xf]
        %v1809 = vld [vmem:[%s703 + $0xc] sm:$0xf]
        %v1814 = vunpack.c.l.b16 %v1806
        %v1815 = vunpack.c.l.b16 %v1807
        %v1816 = vunpack.c.l.b16 %v1808
        %v1817 = vunpack.c.l.b16 %v1809
        %v1818 = vpack.c.b16 %v1815, %v1814
        %v1819 = vpack.c.b16 %v1817, %v1816
        %v1823 = vsel %vm744, %v1805, 0
        %1825 = vmatprep.subr.bf16.mxu0 0
        %1826 = vmatpush1.bf16.msra.mxu0 %v1818
        %1827 = vmatprep.subr.bf16.mxu0 0
        %1828 = vmatpush1.bf16.msra.mxu0 %v1819
        %1829 = vmatprep.subr.bf16.mxu0 0
        %1830 = vmatpush1.bf16.msra.mxu0 0
        %1831 = vmatprep.subr.bf16.mxu0 0
        %1832 = vmatpush1.bf16.msra.mxu0 0
        %1833 = vmatprep.subr.bf16.mxu0 0
        %1834 = vmatpush1.bf16.msra.mxu0 0
        %1835 = vmatprep.subr.bf16.mxu0 0
        %1836 = vmatpush1.bf16.msra.mxu0 0
        %1837 = vmatprep.subr.bf16.mxu0 0
        %1838 = vmatpush1.bf16.msra.mxu0 0
        %1839 = vmatprep.subr.bf16.mxu0 0
        %1840 = vmatpush1.bf16.msra.mxu0 0
        %1841 = vmatprep.subr.bf16.mxu0 0
        %1842 = vmatpush1.bf16.msra.mxu0 0
        %1843 = vmatprep.subr.bf16.mxu0 0
        %1844 = vmatpush1.bf16.msra.mxu0 0
        %1845 = vmatprep.subr.bf16.mxu0 0
        %1846 = vmatpush1.bf16.msra.mxu0 0
        %1847 = vmatprep.subr.bf16.mxu0 0
        %1848 = vmatpush1.bf16.msra.mxu0 0
        %1849 = vmatprep.subr.bf16.mxu0 0
        %1850 = vmatpush1.bf16.msra.mxu0 0
        %1851 = vmatprep.subr.bf16.mxu0 0
        %1852 = vmatpush1.bf16.msra.mxu0 0
        %1853 = vmatprep.subr.bf16.mxu0 0
        %1854 = vmatpush1.bf16.msra.mxu0 0
        %1855 = vmatprep.subr.bf16.mxu0 0
        %1856 = vmatpush1.bf16.msra.mxu0 0
        %1857 = vmatprep.mubr.bf16.mxu0 0
        %1858 = vmatmul.mubr.bf16.gmra.mrb[0].mxu0 %v1823
        %v1859 = vpop.f32.mrb[0].mxu0
        %v1860 = vadd.f32 0.0, %v1859
        %v1861 = vpop.f32.mrb[0].mxu0
        %v1862 = vpop.f32.mrb[0].mxu0
        %v1863 = vadd.f32 0.0, %v1862
        %v1864 = vpop.f32.mrb[0].mxu0
        %1865 = vdwg.mxu0
        %v1866 = vadd.f32 %v734, %v1860
        %v1867 = vadd.f32 %v735, %v1863
        %v1868 = vld [vmem:[%s706] sm:$0x1]
        %v1870 = vlaneseq
        %v1871 = vshrl.u32 %v1870, 7
        %v1872 = vsub.s32 0, %v1871
        %v1873 = vrot.slane %v1868, %v1872
        %v1875 = vadd.f32 %v1866, %v1873
        %v1876 = vadd.f32 %v1867, %v1873
        %v1877 = vld [vmem:[%s709] sm:$0x1]
        %v1878 = vld [vmem:[%s586] sm:$0x1]
        %v1879 = vsel %vm744, %v1875, 0.0
        %1880 = vadd.xlane.f32.xlu0 %v1879
        %v1881 = vpop.xlane.xlu0 %1880
        %v1882 = vsel %vm744, %v1876, 0.0
        %1883 = vadd.xlane.f32.xlu0 %v1882
        %v1884 = vpop.xlane.xlu0 %1883
        %v1885 = vmul.f32 %v1881, %v751
        %v1886 = vmul.f32 %v1884, %v751
        %v1887 = vsub.f32 %v1875, %v1885
        %v1888 = vsub.f32 %v1876, %v1886
        %v1889 = vmul.f32 %v1887, %v1887
        %v1890 = vmul.f32 %v1888, %v1888
        %v1891 = vsel %vm744, %v1889, 0.0
        %1892 = vadd.xlane.f32.xlu0 %v1891
        %v1893 = vpop.xlane.xlu0 %1892
        %v1894 = vsel %vm744, %v1890, 0.0
        %1895 = vadd.xlane.f32.xlu0 %v1894
        %v1896 = vpop.xlane.xlu0 %1895
        %v1897 = vmul.f32 %v1893, %v751
        %v1898 = vmul.f32 %v1896, %v751
        %v1899 = vadd.f32 %v1897, 1e-05
        %v1900 = vadd.f32 %v1898, 1e-05
        %v1901 = vrsqrt.pop %v1899
        %v1902 = vrsqrt.pop %v1900
        %v1903 = vmul.f32 %v1887, %v1901
        %v1904 = vmul.f32 %v1888, %v1902
        %v1906 = vlaneseq
        %v1907 = vshrl.u32 %v1906, 7
        %v1908 = vsub.s32 0, %v1907
        %v1909 = vrot.slane %v1877, %v1908
        %v1911 = vmul.f32 %v1903, %v1909
        %v1912 = vmul.f32 %v1904, %v1909
        %v1914 = vlaneseq
        %v1915 = vshrl.u32 %v1914, 7
        %v1916 = vsub.s32 0, %v1915
        %v1917 = vrot.slane %v1878, %v1916
        %v1919 = vadd.f32 %v1911, %v1917
        %v1920 = vadd.f32 %v1912, %v1917
        %v1921 = vpack.c.bf16 %v1920, %v1919
        %v1922 = vld [vmem:[%s714] sm:$0xf]
        %v1923 = vld [vmem:[%s714 + $0x4] sm:$0xf]
        %v1924 = vld [vmem:[%s714 + $0x8] sm:$0xf]
        %v1925 = vld [vmem:[%s714 + $0xc] sm:$0xf]
        %v1926 = vld [vmem:[%s594] sm:$0x1]
        %v1928 = vlaneseq
        %v1929 = vshrl.u32 %v1928, 7
        %v1930 = vsub.s32 0, %v1929
        %v1931 = vrot.slane %v1926, %v1930
        %v1937 = vunpack.c.l.b16 %v1922
        %v1938 = vunpack.c.l.b16 %v1923
        %v1939 = vunpack.c.l.b16 %v1924
        %v1940 = vunpack.c.l.b16 %v1925
        %v1941 = vpack.c.b16 %v1938, %v1937
        %v1942 = vpack.c.b16 %v1940, %v1939
        %v1946 = vsel %vm744, %v1921, 0
        %1948 = vmatprep.subr.bf16.mxu0 0
        %1949 = vmatpush1.bf16.msra.mxu0 %v1941
        %1950 = vmatprep.subr.bf16.mxu0 0
        %1951 = vmatpush1.bf16.msra.mxu0 %v1942
        %1952 = vmatprep.subr.bf16.mxu0 0
        %1953 = vmatpush1.bf16.msra.mxu0 0
        %1954 = vmatprep.subr.bf16.mxu0 0
        %1955 = vmatpush1.bf16.msra.mxu0 0
        %1956 = vmatprep.subr.bf16.mxu0 0
        %1957 = vmatpush1.bf16.msra.mxu0 0
        %1958 = vmatprep.subr.bf16.mxu0 0
        %1959 = vmatpush1.bf16.msra.mxu0 0
        %1960 = vmatprep.subr.bf16.mxu0 0
        %1961 = vmatpush1.bf16.msra.mxu0 0
        %1962 = vmatprep.subr.bf16.mxu0 0
        %1963 = vmatpush1.bf16.msra.mxu0 0
        %1964 = vmatprep.subr.bf16.mxu0 0
        %1965 = vmatpush1.bf16.msra.mxu0 0
        %1966 = vmatprep.subr.bf16.mxu0 0
        %1967 = vmatpush1.bf16.msra.mxu0 0
        %1968 = vmatprep.subr.bf16.mxu0 0
        %1969 = vmatpush1.bf16.msra.mxu0 0
        %1970 = vmatprep.subr.bf16.mxu0 0
        %1971 = vmatpush1.bf16.msra.mxu0 0
        %1972 = vmatprep.subr.bf16.mxu0 0
        %1973 = vmatpush1.bf16.msra.mxu0 0
        %1974 = vmatprep.subr.bf16.mxu0 0
        %1975 = vmatpush1.bf16.msra.mxu0 0
        %1976 = vmatprep.subr.bf16.mxu0 0
        %1977 = vmatpush1.bf16.msra.mxu0 0
        %1978 = vmatprep.subr.bf16.mxu0 0
        %1979 = vmatpush1.bf16.msra.mxu0 0
        %1980 = vmatprep.mubr.bf16.mxu0 0
        %1981 = vmatmul.mubr.bf16.gmra.mrb[0].mxu0 %v1946
        %v1982 = vpop.f32.mrb[0].mxu0
        %v1983 = vadd.f32 %v1931, %v1982
        %v1984 = vpop.f32.mrb[0].mxu0
        %v1985 = vpop.f32.mrb[0].mxu0
        %v1986 = vadd.f32 %v1931, %v1985
        %v1987 = vpop.f32.mrb[0].mxu0
        %1988 = vdwg.mxu0
        %v1989 = vmul.f32 %v1983, %v1983
        %v1990 = vmul.f32 %v1986, %v1986
        %v1991 = vmul.f32 %v1983, %v1989
        %v1992 = vmul.f32 %v1986, %v1990
        %v1993 = vmul.f32 %v1991, 0.044715
        %v1994 = vmul.f32 %v1992, 0.044715
        %v1995 = vadd.f32 %v1983, %v1993
        %v1996 = vadd.f32 %v1986, %v1994
        %v1997 = vmul.f32 %v1995, 0.7978846
        %v1998 = vmul.f32 %v1996, 0.7978846
        %v1999 = vtanh.pop %v1997
        %v2000 = vtanh.pop %v1998
        %v2001 = vadd.f32 %v1999, 1.0
        %v2002 = vadd.f32 %v2000, 1.0
        %v2003 = vmul.f32 %v2001, 0.5
        %v2004 = vmul.f32 %v2002, 0.5
        %v2005 = vmul.f32 %v1983, %v2003
        %v2006 = vmul.f32 %v1986, %v2004
        %v2007 = vpack.c.bf16 %v2006, %v2005
        %v2008 = vld [vmem:[%s719] sm:$0xf]
        %v2009 = vld [vmem:[%s719 + $0x4] sm:$0xf]
        %v2010 = vld [vmem:[%s719 + $0x8] sm:$0xf]
        %v2011 = vld [vmem:[%s719 + $0xc] sm:$0xf]
        %v2012 = vld [vmem:[%s719 + $0x10] sm:$0xf]
        %v2013 = vld [vmem:[%s719 + $0x14] sm:$0xf]
        %v2014 = vld [vmem:[%s719 + $0x18] sm:$0xf]
        %v2015 = vld [vmem:[%s719 + $0x1c] sm:$0xf]
        %v2016 = vld [vmem:[%s722] sm:$0x1]
        %v2018 = vlaneseq
        %v2019 = vshrl.u32 %v2018, 7
        %v2020 = vsub.s32 0, %v2019
        %v2021 = vrot.slane %v2016, %v2020
        %v2031 = vunpack.c.l.b16 %v2008
        %v2032 = vunpack.c.l.b16 %v2009
        %v2033 = vunpack.c.l.b16 %v2010
        %v2034 = vunpack.c.l.b16 %v2011
        %v2035 = vunpack.c.l.b16 %v2012
        %v2036 = vunpack.c.l.b16 %v2013
        %v2037 = vunpack.c.l.b16 %v2014
        %v2038 = vunpack.c.l.b16 %v2015
        %v2039 = vpack.c.b16 %v2032, %v2031
        %v2040 = vpack.c.b16 %v2034, %v2033
        %v2041 = vpack.c.b16 %v2036, %v2035
        %v2042 = vpack.c.b16 %v2038, %v2037
        %vm2047 = vcmask 523264
        %v2049 = vsel %vm2047, %v2007, 0
        %2051 = vmatprep.subr.bf16.mxu0 0
        %2052 = vmatpush1.bf16.msra.mxu0 %v2039
        %2053 = vmatprep.subr.bf16.mxu0 0
        %2054 = vmatpush1.bf16.msra.mxu0 %v2040
        %2055 = vmatprep.subr.bf16.mxu0 0
        %2056 = vmatpush1.bf16.msra.mxu0 %v2041
        %2057 = vmatprep.subr.bf16.mxu0 0
        %2058 = vmatpush1.bf16.msra.mxu0 %v2042
        %2059 = vmatprep.subr.bf16.mxu0 0
        %2060 = vmatpush1.bf16.msra.mxu0 0
        %2061 = vmatprep.subr.bf16.mxu0 0
        %2062 = vmatpush1.bf16.msra.mxu0 0
        %2063 = vmatprep.subr.bf16.mxu0 0
        %2064 = vmatpush1.bf16.msra.mxu0 0
        %2065 = vmatprep.subr.bf16.mxu0 0
        %2066 = vmatpush1.bf16.msra.mxu0 0
        %2067 = vmatprep.subr.bf16.mxu0 0
        %2068 = vmatpush1.bf16.msra.mxu0 0
        %2069 = vmatprep.subr.bf16.mxu0 0
        %2070 = vmatpush1.bf16.msra.mxu0 0
        %2071 = vmatprep.subr.bf16.mxu0 0
        %2072 = vmatpush1.bf16.msra.mxu0 0
        %2073 = vmatprep.subr.bf16.mxu0 0
        %2074 = vmatpush1.bf16.msra.mxu0 0
        %2075 = vmatprep.subr.bf16.mxu0 0
        %2076 = vmatpush1.bf16.msra.mxu0 0
        %2077 = vmatprep.subr.bf16.mxu0 0
        %2078 = vmatpush1.bf16.msra.mxu0 0
        %2079 = vmatprep.subr.bf16.mxu0 0
        %2080 = vmatpush1.bf16.msra.mxu0 0
        %2081 = vmatprep.subr.bf16.mxu0 0
        %2082 = vmatpush1.bf16.msra.mxu0 0
        %2083 = vmatprep.mubr.bf16.mxu0 0
        %2084 = vmatmul.mubr.bf16.gmra.mrb[0].mxu0 %v2049
        %v2085 = vpop.f32.mrb[0].mxu0
        %v2086 = vadd.f32 %v2021, %v2085
        %v2087 = vpop.f32.mrb[0].mxu0
        %v2088 = vpop.f32.mrb[0].mxu0
        %v2089 = vadd.f32 %v2021, %v2088
        %v2090 = vpop.f32.mrb[0].mxu0
        %2091 = vdwg.mxu0
        %v2092 = vadd.f32 %v1875, %v2086
        %v2093 = vadd.f32 %v1876, %v2089
        %2094 = vst.msk [vmem:[#allocation9] sm:$0xff] %vm744, %v2092
        %2095 = vst.msk [vmem:[#allocation9 + $0x8] sm:$0xff] %vm744, %v2093
        // Predicated region
        $region93: #{tpu_custom_call.1} parent=75 // pred_check
          %p2096 = pneg %p424
        $region94: #{tpu_custom_call.1} parent=75 // pred_check_branch
          %2098 = sbr.rel (%p2096) target = $region96
        $region95: #{tpu_custom_call.1} parent=75 // pred_region
          %s2099 = smul.u32 2, %s34
          %s2101 = ssub.s32 256, 256
          %2102 = vsyncadd [#allocation5], %s2101
          %s2103 = smul.addr %s2099, 128
          %s2104 = scalar_lea.hbm %s14, %s2103
          %s2105 = sshll.u32 [#allocation9], 4
          %s2106 = int_to_ptr.vmem [resolvable:$true] %s2105
          %2111 = dma.vmem_to_hbm [thread:$0]  %s2106, 256, %s2104, [#allocation5], 128, 128, 8
        $region96: #{tpu_custom_call.1} parent=75 // pred_fallthru
          _
        // Predicated region
        $region97: #{tpu_custom_call.1} parent=75 // pred_check
          %p2112 = pneg %p424
        $region98: #{tpu_custom_call.1} parent=75 // pred_check_branch
          %2114 = sbr.rel (%p2112) target = $region100
        $region99: #{tpu_custom_call.1} parent=75 // pred_region
          %2115 = dma.done [#allocation5], 256
        $region100: #{tpu_custom_call.1} parent=75 // pred_fallthru
          _
      $region76: #{tpu_custom_call.1} parent=5 // pred_fallthru
        _
      %p2116 = scmp.le.s32.totalorder 2, %s25
      // Predicated region
      $region101: #{tpu_custom_call.1} parent=5 // pred_check
        %p2117 = pneg %p2116
      $region102: #{tpu_custom_call.1} parent=5 // pred_check_branch
        %2119 = sbr.rel (%p2117) target = $region104
      $region103: #{tpu_custom_call.1} parent=5 // pred_region
        %s2120 = ssub.s32 %s25, 2
      $region104: #{tpu_custom_call.1} parent=5 // pred_fallthru
        _
    $region6: #{tpu_custom_call.1} parent=1 // loop_footer
      %s29 = sadd.s32 1, %s25
    $region7: #{tpu_custom_call.1} parent=1 // loop_footer_branch
      %24 = sbr.rel target = $region3
    $region8: #{tpu_custom_call.1} parent=1 // loop_exit
      _
    %2121 = vsyncpa [#allocation4], 1
    %s2122 = scalar_lea.sflag [#allocation4], 1
    %2123 = vsyncpa %s2122, 1
    %2124 = vsyncpa [#allocation7], 1
    %s2125 = scalar_lea.sflag [#allocation7], 1
    %2126 = vsyncpa %s2125, 1
    %2127 = vsyncpa [#allocation5], 1
    %s2128 = scalar_lea.sflag [#allocation5], 1
    %2129 = vsyncpa %s2128, 1

</llo_original>
